<compile_context>
chip_gen: v7x
topology: tpu7x:2x2x1
jax: 0.10.0
libtpu: 0.0.40
codegen_flags: <defaults>
</compile_context>

<pallas_src>
import math
import functools

import jax
import jax.numpy as jnp
from jax.experimental import pallas as pl
from jax.experimental.pallas import tpu as pltpu


def _const_spec(shape):
    """BlockSpec for a grid-invariant (fully resident) operand."""
    zeros = (0,) * len(shape)
    return pl.BlockSpec(shape, lambda i, _z=zeros: _z)


# -----------------------------------------------------------------------------
# Per-node-tile kernel (runs over the 1-D node grid).
# -----------------------------------------------------------------------------
def global_attention_kernel(x_ref, wq_ref, bq_ref, kbd_ref, ones_ref, vwo_ref,
                            bo_ref, gamma_ref, beta_ref, o_ref, *, ln_eps):
    x_in = x_ref[...]                                   # (TN, D), compute dtype
    x_f32 = x_in.astype(jnp.float32)                    # residual path in f32

    # Q projection: one full-width (TN,D)x(D,D) matmul, f32 accumulation.
    q = jnp.dot(x_in, wq_ref[...],
                preferred_element_type=jnp.float32) + bq_ref[...]       # (TN, D)

    # Packed per-head scores: q @ blockdiag(K_h^T / sqrt(hd)) -> (TN, H*C),
    # lane-dense (head h occupies columns h*C:(h+1)*C).
    s = jnp.dot(q.astype(kbd_ref.dtype), kbd_ref[...],
                preferred_element_type=jnp.float32)                     # (TN, P)

    # Per-head softmax over each C-lane segment.  Subtracting the global row
    # max is a valid per-segment stabilizer (same constant in every segment).
    s = s - jnp.max(s, axis=-1, keepdims=True)
    e = jnp.exp(s)
    # Segmented (per-head) sum, broadcast within each segment, via a
    # block-diagonal ones matmul — keeps the path lane-dense; MXU has slack.
    denom = jnp.dot(e, ones_ref[...], preferred_element_type=jnp.float32)
    p = e * pl.reciprocal(denom, approx=True)           # approx EUP reciprocal
    # dropout(p): identity in eval mode.

    # Attended values with the output projection pre-folded:
    #   p_packed @ VWo_stacked == concat_h(p_h @ V_h) @ Wo
    out = jnp.dot(p.astype(vwo_ref.dtype), vwo_ref[...],
                  preferred_element_type=jnp.float32) + bo_ref[...]     # (TN, D)

    # Residual + LayerNorm over the hidden dim (f32).
    y = out + x_f32
    mean = jnp.mean(y, axis=-1, keepdims=True)
    var = jnp.mean(jnp.square(y - mean), axis=-1, keepdims=True)
    y_norm = (y - mean) * jax.lax.rsqrt(var + ln_eps)
    o_ref[...] = (y_norm * gamma_ref[...] + beta_ref[...]).astype(o_ref.dtype)


# -----------------------------------------------------------------------------
# Wrapper
# -----------------------------------------------------------------------------
def global_attention_forward(x, centroids, params, *, num_heads, tile_n=128,
                             compute_dtype=jnp.float32, ln_eps=1e-5):
    N, D = x.shape
    C = centroids.shape[0]
    head_dim = D // num_heads
    P = num_heads * C                       # packed lane width of the score block
    tile_n = min(tile_n, N)
    assert N % tile_n == 0  # TODO(synk): no ragged-tail handling

    f32 = jnp.float32
    scale = 1.0 / math.sqrt(head_dim)

    # ---- grid-invariant centroid-side precompute: plain JAX, one-shot ------
    k = centroids.astype(f32) @ params["wk"].astype(f32) + params["bk"].astype(f32)  # (C, D)
    v = centroids.astype(f32) @ params["wv"].astype(f32) + params["bv"].astype(f32)  # (C, D)
    wo = params["wo"].astype(f32)

    # Block-diagonal K^T (scale folded): kbd[h*hd:(h+1)*hd, h*C:(h+1)*C] = K_h^T/sqrt(hd)
    kbd = jnp.zeros((D, P), f32)
    # Stacked V @ Wo[h rows]: vwo[h*C:(h+1)*C, :] = V_h @ Wo[h*hd:(h+1)*hd, :]
    vwo = jnp.zeros((P, D), f32)
    for h in range(num_heads):
        lo, hi = h * head_dim, (h + 1) * head_dim
        kbd = kbd.at[lo:hi, h * C:(h + 1) * C].set(k[:, lo:hi].T * scale)
        vwo = vwo.at[h * C:(h + 1) * C, :].set(v[:, lo:hi] @ wo[lo:hi, :])

    # Block-diagonal ones for the per-head segmented softmax denominator.
    ones_bd = jnp.kron(jnp.eye(num_heads, dtype=f32), jnp.ones((C, C), f32))   # (P, P)

    # Matmul operands in compute_dtype (bf16 halves DMA bytes and hits the
    # bf16-native MXU on v6e/v7x); biases / LN params / accumulation stay f32.
    x_c = x.astype(compute_dtype)
    wq_c = params["wq"].astype(compute_dtype)
    kbd_c = kbd.astype(compute_dtype)
    vwo_c = vwo.astype(compute_dtype)

    kernel = functools.partial(global_attention_kernel, ln_eps=ln_eps)

    return pl.pallas_call(
        kernel,
        out_shape=jax.ShapeDtypeStruct((N, D), jnp.float32),
        grid_spec=pltpu.PrefetchScalarGridSpec(
            num_scalar_prefetch=0,
            grid=(N // tile_n,),
            in_specs=[
                pl.BlockSpec((tile_n, D), lambda i: (i, 0)),   # x tile
                _const_spec((D, D)),                           # Wq
                _const_spec((1, D)),                           # bq
                _const_spec((D, P)),                           # Kbd (block-diag K^T, scaled)
                _const_spec((P, P)),                           # block-diag ones
                _const_spec((P, D)),                           # VWo (stacked V_h @ Wo_h)
                _const_spec((1, D)),                           # bo
                _const_spec((1, D)),                           # gamma
                _const_spec((1, D)),                           # beta
            ],
            out_specs=pl.BlockSpec((tile_n, D), lambda i: (i, 0)),
        ),
        compiler_params=pltpu.CompilerParams(
            dimension_semantics=("parallel",)),
    )(x_c, wq_c, params["bq"].astype(f32), kbd_c, ones_bd, vwo_c,
      params["bo"].astype(f32), params["gamma"].astype(f32),
      params["beta"].astype(f32))


def reference_forward(x, centroids, params, *, num_heads):
    """Pure-JAX reference mirroring the PyTorch forward (eval mode)."""
    D = x.shape[1]
    hd = D // num_heads
    q = x @ params["wq"] + params["bq"]
    k = centroids @ params["wk"] + params["bk"]
    v = centroids @ params["wv"] + params["bv"]
    outs = []
    for h in range(num_heads):
        qh, kh, vh = (t[:, h * hd:(h + 1) * hd] for t in (q, k, v))
        s = qh @ kh.T / math.sqrt(hd)
        p = jax.nn.softmax(s, axis=-1)
        outs.append(p @ vh)
    ctx = jnp.concatenate(outs, axis=-1)
    out = ctx @ params["wo"] + params["bo"]
    y = out + x
    mean = y.mean(-1, keepdims=True)
    var = ((y - mean) ** 2).mean(-1, keepdims=True)
    yn = (y - mean) / jnp.sqrt(var + 1e-5)
    return yn * params["gamma"] + params["beta"]


if __name__ == "__main__":
    # hidden_dim multiple of 128 (lane-dense hidden axis); num_heads*num_centroids
    # = 128 so the packed score block is also lane-dense; num_nodes/tile_n = 4
    # programs so each v7x TensorCore gets >= 2 pipelined steps.
    num_nodes, hidden_dim, num_heads, num_centroids = 512, 128, 4, 32

    key = jax.random.PRNGKey(0)
    ks = jax.random.split(key, 12)

    x = jax.random.normal(ks[0], (num_nodes, hidden_dim), jnp.float32)
    centroids = jax.random.normal(ks[1], (num_centroids, hidden_dim), jnp.float32)

    def lin(kw, kb):
        bound = 1.0 / math.sqrt(hidden_dim)
        w = jax.random.uniform(kw, (hidden_dim, hidden_dim), jnp.float32, -bound, bound)
        b = jax.random.uniform(kb, (1, hidden_dim), jnp.float32, -bound, bound)
        return w, b

    wq, bq = lin(ks[2], ks[3])
    wk, bk = lin(ks[4], ks[5])
    wv, bv = lin(ks[6], ks[7])
    wo, bo = lin(ks[8], ks[9])
    params = dict(
        wq=wq, bq=bq, wk=wk, bk=bk, wv=wv, bv=bv, wo=wo, bo=bo,
        gamma=jnp.ones((1, hidden_dim), jnp.float32),
        beta=jnp.zeros((1, hidden_dim), jnp.float32),
    )

    ref = reference_forward(x, centroids, params, num_heads=num_heads)

    # f32 matmul operands: tight tolerance (covers the approx EUP reciprocal).
    out_f32 = jax.block_until_ready(
        global_attention_forward(x, centroids, params, num_heads=num_heads,
                                 tile_n=128, compute_dtype=jnp.float32))
    assert out_f32.shape == (num_nodes, hidden_dim)
    assert jnp.allclose(out_f32, ref, atol=1e-3, rtol=1e-3), \
        float(jnp.max(jnp.abs(out_f32 - ref)))

    # bf16 matmul operands (v6e/v7x MXU-native), f32 accumulation + f32 LayerNorm:
    # relaxed tolerance for bf16 rounding of inputs/weights.
    out_bf16 = jax.block_until_ready(
        global_attention_forward(x, centroids, params, num_heads=num_heads,
                                 tile_n=128, compute_dtype=jnp.bfloat16))
    assert jnp.allclose(out_bf16, ref, atol=5e-2, rtol=5e-2), \
        float(jnp.max(jnp.abs(out_bf16 - ref)))

    print("KERNEL_OK")
</pallas_src>

<mosaic_0001>
module attributes {stable_mosaic.version = 11 : i64} {
  func.func @global_attention_kernel(%arg0: i32, %arg1: memref<128x128xf32, #tpu.memory_space<vmem>>, %arg2: memref<128x128xf32, #tpu.memory_space<vmem>>, %arg3: memref<1x128xf32, #tpu.memory_space<vmem>>, %arg4: memref<128x128xf32, #tpu.memory_space<vmem>>, %arg5: memref<128x128xf32, #tpu.memory_space<vmem>>, %arg6: memref<128x128xf32, #tpu.memory_space<vmem>>, %arg7: memref<1x128xf32, #tpu.memory_space<vmem>>, %arg8: memref<1x128xf32, #tpu.memory_space<vmem>>, %arg9: memref<1x128xf32, #tpu.memory_space<vmem>>, %arg10: memref<128x128xf32, #tpu.memory_space<vmem>>) attributes {dimension_semantics = [#tpu.dimension_semantics<parallel>], iteration_bounds = array<i64: 4>, scalar_prefetch = 0 : i64, scratch_operands = 0 : i64, tpu.core_type = #tpu.core_type<tc>, window_params = [{transform_indices = @transform_0, window_bounds = array<i64: 128, 128>}, {pipeline_mode = #tpu.pipeline_mode<synchronous>, transform_indices = @transform_1, window_bounds = array<i64: 128, 128>}, {pipeline_mode = #tpu.pipeline_mode<synchronous>, transform_indices = @transform_2, window_bounds = array<i64: 1, 128>}, {pipeline_mode = #tpu.pipeline_mode<synchronous>, transform_indices = @transform_3, window_bounds = array<i64: 128, 128>}, {pipeline_mode = #tpu.pipeline_mode<synchronous>, transform_indices = @transform_4, window_bounds = array<i64: 128, 128>}, {pipeline_mode = #tpu.pipeline_mode<synchronous>, transform_indices = @transform_5, window_bounds = array<i64: 128, 128>}, {pipeline_mode = #tpu.pipeline_mode<synchronous>, transform_indices = @transform_6, window_bounds = array<i64: 1, 128>}, {pipeline_mode = #tpu.pipeline_mode<synchronous>, transform_indices = @transform_7, window_bounds = array<i64: 1, 128>}, {pipeline_mode = #tpu.pipeline_mode<synchronous>, transform_indices = @transform_8, window_bounds = array<i64: 1, 128>}, {transform_indices = @transform_9, window_bounds = array<i64: 128, 128>}]} {
    %c0 = arith.constant 0 : index
    %c0_0 = arith.constant 0 : index
    %0 = vector.load %arg1[%c0, %c0_0] : memref<128x128xf32, #tpu.memory_space<vmem>>, vector<128x128xf32>
    %c0_1 = arith.constant 0 : index
    %c0_2 = arith.constant 0 : index
    %1 = vector.load %arg2[%c0_1, %c0_2] : memref<128x128xf32, #tpu.memory_space<vmem>>, vector<128x128xf32>
    %cst = arith.constant dense<0.000000e+00> : vector<128x128xf32>
    %2 = tpu.matmul %0, %1, %cst {dimension_numbers = #tpu.dot_dimension_numbers<[1], [0], [0], [1], [0, 0, 1, 1], [], []>} : vector<128x128xf32>, vector<128x128xf32>, vector<128x128xf32> -> vector<128x128xf32>
    %c0_3 = arith.constant 0 : index
    %c0_4 = arith.constant 0 : index
    %3 = vector.load %arg3[%c0_3, %c0_4] : memref<1x128xf32, #tpu.memory_space<vmem>>, vector<1x128xf32>
    %4 = vector.broadcast %3 : vector<1x128xf32> to vector<128x128xf32>
    %5 = arith.addf %2, %4 : vector<128x128xf32>
    %c0_5 = arith.constant 0 : index
    %c0_6 = arith.constant 0 : index
    %6 = vector.load %arg4[%c0_5, %c0_6] : memref<128x128xf32, #tpu.memory_space<vmem>>, vector<128x128xf32>
    %cst_7 = arith.constant dense<0.000000e+00> : vector<128x128xf32>
    %7 = tpu.matmul %5, %6, %cst_7 {dimension_numbers = #tpu.dot_dimension_numbers<[1], [0], [0], [1], [0, 0, 1, 1], [], []>} : vector<128x128xf32>, vector<128x128xf32>, vector<128x128xf32> -> vector<128x128xf32>
    %cst_8 = arith.constant dense<0xFF800000> : vector<128xf32>
    %8 = vector.multi_reduction <maximumf>, %7, %cst_8 [1] : vector<128x128xf32> to vector<128xf32>
    %9 = vector.shape_cast %8 : vector<128xf32> to vector<128x1xf32>
    %10 = vector.broadcast %9 : vector<128x1xf32> to vector<128x128xf32>
    %11 = arith.subf %7, %10 : vector<128x128xf32>
    %12 = math.exp %11 : vector<128x128xf32>
    %c0_9 = arith.constant 0 : index
    %c0_10 = arith.constant 0 : index
    %13 = vector.load %arg5[%c0_9, %c0_10] : memref<128x128xf32, #tpu.memory_space<vmem>>, vector<128x128xf32>
    %cst_11 = arith.constant dense<0.000000e+00> : vector<128x128xf32>
    %14 = tpu.matmul %12, %13, %cst_11 {dimension_numbers = #tpu.dot_dimension_numbers<[1], [0], [0], [1], [0, 0, 1, 1], [], []>} : vector<128x128xf32>, vector<128x128xf32>, vector<128x128xf32> -> vector<128x128xf32>
    %15 = tpu.reciprocal %14 {approx = true} : vector<128x128xf32> -> vector<128x128xf32>
    %16 = arith.mulf %12, %15 : vector<128x128xf32>
    %c0_12 = arith.constant 0 : index
    %c0_13 = arith.constant 0 : index
    %17 = vector.load %arg6[%c0_12, %c0_13] : memref<128x128xf32, #tpu.memory_space<vmem>>, vector<128x128xf32>
    %cst_14 = arith.constant dense<0.000000e+00> : vector<128x128xf32>
    %18 = tpu.matmul %16, %17, %cst_14 {dimension_numbers = #tpu.dot_dimension_numbers<[1], [0], [0], [1], [0, 0, 1, 1], [], []>} : vector<128x128xf32>, vector<128x128xf32>, vector<128x128xf32> -> vector<128x128xf32>
    %c0_15 = arith.constant 0 : index
    %c0_16 = arith.constant 0 : index
    %19 = vector.load %arg7[%c0_15, %c0_16] : memref<1x128xf32, #tpu.memory_space<vmem>>, vector<1x128xf32>
    %20 = vector.broadcast %19 : vector<1x128xf32> to vector<128x128xf32>
    %21 = arith.addf %18, %20 : vector<128x128xf32>
    %22 = arith.addf %21, %0 : vector<128x128xf32>
    %cst_17 = arith.constant dense<0.000000e+00> : vector<128xf32>
    %23 = vector.multi_reduction <add>, %22, %cst_17 [1] : vector<128x128xf32> to vector<128xf32>
    %24 = vector.shape_cast %23 : vector<128xf32> to vector<128x1xf32>
    %cst_18 = arith.constant 1.280000e+02 : f32
    %25 = vector.broadcast %cst_18 : f32 to vector<128x1xf32>
    %26 = arith.divf %24, %25 : vector<128x1xf32>
    %27 = vector.broadcast %26 : vector<128x1xf32> to vector<128x128xf32>
    %28 = arith.subf %22, %27 : vector<128x128xf32>
    %29 = arith.mulf %28, %28 : vector<128x128xf32>
    %cst_19 = arith.constant dense<0.000000e+00> : vector<128xf32>
    %30 = vector.multi_reduction <add>, %29, %cst_19 [1] : vector<128x128xf32> to vector<128xf32>
    %31 = vector.shape_cast %30 : vector<128xf32> to vector<128x1xf32>
    %cst_20 = arith.constant 1.280000e+02 : f32
    %32 = vector.broadcast %cst_20 : f32 to vector<128x1xf32>
    %33 = arith.divf %31, %32 : vector<128x1xf32>
    %34 = vector.broadcast %26 : vector<128x1xf32> to vector<128x128xf32>
    %35 = arith.subf %22, %34 : vector<128x128xf32>
    %cst_21 = arith.constant 9.99999974E-6 : f32
    %36 = vector.broadcast %cst_21 : f32 to vector<128x1xf32>
    %37 = arith.addf %33, %36 : vector<128x1xf32>
    %38 = math.rsqrt %37 : vector<128x1xf32>
    %39 = vector.broadcast %38 : vector<128x1xf32> to vector<128x128xf32>
    %40 = arith.mulf %35, %39 : vector<128x128xf32>
    %c0_22 = arith.constant 0 : index
    %c0_23 = arith.constant 0 : index
    %41 = vector.load %arg8[%c0_22, %c0_23] : memref<1x128xf32, #tpu.memory_space<vmem>>, vector<1x128xf32>
    %42 = vector.broadcast %41 : vector<1x128xf32> to vector<128x128xf32>
    %43 = arith.mulf %40, %42 : vector<128x128xf32>
    %c0_24 = arith.constant 0 : index
    %c0_25 = arith.constant 0 : index
    %44 = vector.load %arg9[%c0_24, %c0_25] : memref<1x128xf32, #tpu.memory_space<vmem>>, vector<1x128xf32>
    %45 = vector.broadcast %44 : vector<1x128xf32> to vector<128x128xf32>
    %46 = arith.addf %43, %45 : vector<128x128xf32>
    %c0_26 = arith.constant 0 : index
    %c0_27 = arith.constant 0 : index
    %47 = vector.load %arg10[%c0_26, %c0_27] : memref<128x128xf32, #tpu.memory_space<vmem>>, vector<128x128xf32>
    tpu.vector_store %arg10[%c0_26, %c0_27], %46 {strides = array<i32>} : memref<128x128xf32, #tpu.memory_space<vmem>>, vector<128x128xf32>,
    return
  }
  func.func @transform_0(%arg0: i32) -> (i32, i32) {
    %c0_i32 = arith.constant 0 : i32
    %c0_i32_0 = arith.constant 0 : i32
    return %arg0, %c0_i32 : i32, i32
  }
  func.func @transform_1(%arg0: i32) -> (i32, i32) {
    %c0_i32 = arith.constant 0 : i32
    %c0_i32_0 = arith.constant 0 : i32
    %c0_i32_1 = arith.constant 0 : i32
    return %c0_i32, %c0_i32_0 : i32, i32
  }
  func.func @transform_2(%arg0: i32) -> (i32, i32) {
    %c0_i32 = arith.constant 0 : i32
    %c0_i32_0 = arith.constant 0 : i32
    %c0_i32_1 = arith.constant 0 : i32
    return %c0_i32, %c0_i32_0 : i32, i32
  }
  func.func @transform_3(%arg0: i32) -> (i32, i32) {
    %c0_i32 = arith.constant 0 : i32
    %c0_i32_0 = arith.constant 0 : i32
    %c0_i32_1 = arith.constant 0 : i32
    return %c0_i32, %c0_i32_0 : i32, i32
  }
  func.func @transform_4(%arg0: i32) -> (i32, i32) {
    %c0_i32 = arith.constant 0 : i32
    %c0_i32_0 = arith.constant 0 : i32
    %c0_i32_1 = arith.constant 0 : i32
    return %c0_i32, %c0_i32_0 : i32, i32
  }
  func.func @transform_5(%arg0: i32) -> (i32, i32) {
    %c0_i32 = arith.constant 0 : i32
    %c0_i32_0 = arith.constant 0 : i32
    %c0_i32_1 = arith.constant 0 : i32
    return %c0_i32, %c0_i32_0 : i32, i32
  }
  func.func @transform_6(%arg0: i32) -> (i32, i32) {
    %c0_i32 = arith.constant 0 : i32
    %c0_i32_0 = arith.constant 0 : i32
    %c0_i32_1 = arith.constant 0 : i32
    return %c0_i32, %c0_i32_0 : i32, i32
  }
  func.func @transform_7(%arg0: i32) -> (i32, i32) {
    %c0_i32 = arith.constant 0 : i32
    %c0_i32_0 = arith.constant 0 : i32
    %c0_i32_1 = arith.constant 0 : i32
    return %c0_i32, %c0_i32_0 : i32, i32
  }
  func.func @transform_8(%arg0: i32) -> (i32, i32) {
    %c0_i32 = arith.constant 0 : i32
    %c0_i32_0 = arith.constant 0 : i32
    %c0_i32_1 = arith.constant 0 : i32
    return %c0_i32, %c0_i32_0 : i32, i32
  }
  func.func @transform_9(%arg0: i32) -> (i32, i32) {
    %c0_i32 = arith.constant 0 : i32
    %c0_i32_0 = arith.constant 0 : i32
    return %arg0, %c0_i32 : i32, i32
  }
}

</mosaic_0001>

<llo_original>
// kernel: tpu_custom_call.1
$region0: #{tpu_custom_call.1}
  #allocation0 [shape = 'u32[]', space=smem, size = 0x4, offset = 0x4, fixed_abs, tag = 'smem constant byte address 0x4 - core index']
  #allocation1 [shape = 'u32[144,128]{1,0:T(1,128)}', space=vmem, size = 0x12000, scoped, tag = 'internal scratch']
  %s0 = inlined_call_operand.hbm [shape: f32[512,128], index: 0, kind: input, shape index: {}]
  %s1 = inlined_call_operand.hbm [shape: f32[128,128], index: 1, kind: input, shape index: {}]
  %s2 = inlined_call_operand.vmem [shape: f32[1,128], index: 2, kind: input, shape index: {}]
  %s3 = inlined_call_operand.hbm [shape: f32[128,128], index: 3, kind: input, shape index: {}]
  %s4 = inlined_call_operand.hbm [shape: f32[128,128], index: 4, kind: input, shape index: {}]
  %s5 = inlined_call_operand.hbm [shape: f32[128,128], index: 5, kind: input, shape index: {}]
  %s6 = inlined_call_operand.vmem [shape: f32[1,128], index: 6, kind: input, shape index: {}]
  %s7 = inlined_call_operand.vmem [shape: f32[1,128], index: 7, kind: input, shape index: {}]
  %s8 = inlined_call_operand.vmem [shape: f32[1,128], index: 8, kind: input, shape index: {}]
  %s9 = inlined_call_operand.hbm [shape: f32[512,128], index: 9, kind: output, shape index: {}]
  %s10 = sld [smem:[#allocation0]]
  $region89: #{tpu_custom_call.1} parent=0
    _
  %s12 = ssub.s32 1, %s10
  %s13 = scalar_select 0, %s12, %s10
  $region1: #{tpu_custom_call.1} parent=0
    #allocation2 [shape = 'u8[131072]{0}', space=vmem, size = 0x20000, scoped, tag = 'input window, operand 0']
    #allocation3 [shape = 's32[2]{0}', space=sflag, size = 0x8, scoped, tag = 'scoped memory for tpu_custom_call.1']
    #allocation4 [shape = 's32[2]{0}', space=sflag, size = 0x8, scoped, tag = 'scoped memory for tpu_custom_call.1']
    #allocation5 [shape = 'u8[65536]{0}', space=vmem, size = 0x10000, scoped, tag = 'input window, operand 1, single buffered']
    #allocation6 [shape = 's32[1]{0}', space=sflag, size = 0x4, scoped, tag = 'scoped memory for tpu_custom_call.1']
    #allocation7 [shape = 'u8[65536]{0}', space=vmem, size = 0x10000, scoped, tag = 'input window, operand 3, single buffered']
    #allocation8 [shape = 'u8[65536]{0}', space=vmem, size = 0x10000, scoped, tag = 'input window, operand 4, single buffered']
    #allocation9 [shape = 's32[1]{0}', space=sflag, size = 0x4, scoped, tag = 'scoped memory for tpu_custom_call.1']
    #allocation10 [shape = 'u8[65536]{0}', space=vmem, size = 0x10000, scoped, tag = 'input window, operand 5, single buffered']
    #allocation11 [shape = 'u8[131072]{0}', space=vmem, size = 0x20000, scoped, tag = 'output window, operand 0']
    %14 = vsyncpa [#allocation3], 0
    %s15 = scalar_lea.sflag [#allocation3], 1
    %16 = vsyncpa %s15, 0
    %17 = vsyncpa [#allocation6], 0
    %18 = vsyncpa [#allocation9], 0
    %19 = vsyncpa [#allocation4], 0
    %s20 = scalar_lea.sflag [#allocation4], 1
    %21 = vsyncpa %s20, 0
    loop: start=0, step=1, limit=6
    $region2: #{tpu_custom_call.1} parent=1 // loop_pre_header
      _
    $region3: #{tpu_custom_call.1} parent=1 // loop_header
      %s23 = sphi 0, %s27
      %p24 = scmp.ge.s32.totalorder %s23, 6
      %s33 = sphi 0, %s35
      %s36 = sphi 0, %s33
      %s37 = sphi 0, %s36
      %s53 = sphi 0, %s37
      %s57 = sphi 0, %s57
      %s59 = sphi 0, %s57
      %s60 = sphi 0, %s59
      %s74 = sphi 0, %s60
      %s78 = sphi 0, %s78
      %s80 = sphi 0, %s78
      %s81 = sphi 0, %s80
      %s95 = sphi 0, %s81
      %s99 = sphi 0, %s99
      %s101 = sphi 0, %s99
      %s102 = sphi 0, %s101
      %s116 = sphi 0, %s102
      %s120 = sphi 0, %s120
      %s122 = sphi 0, %s120
      %s123 = sphi 0, %s122
      %s137 = sphi 0, %s123
      %s141 = sphi 0, %s141
      %s143 = sphi 0, %s141
      %s144 = sphi 0, %s143
      %s158 = sphi 0, %s144
      %s162 = sphi 0, %s162
      %s164 = sphi 0, %s162
      %s165 = sphi 0, %s164
      %s179 = sphi 0, %s165
      %s183 = sphi 0, %s183
      %s185 = sphi 0, %s183
      %s186 = sphi 0, %s185
      %s200 = sphi 0, %s186
      %s204 = sphi 0, %s204
      %s206 = sphi 0, %s204
      %s207 = sphi 0, %s206
      %s221 = sphi 0, %s207
      %s227 = sphi 0, %s229
      %s230 = sphi 0, %s227
      %s231 = sphi 0, %s230
      %s247 = sphi 0, %s231
    $region4: #{tpu_custom_call.1} parent=1 // loop_header_branch
      %26 = sbr.rel (%p24) target = $region8
    $region5: #{tpu_custom_call.1} parent=1 // loop_body
      %s28 = ssub.s32 %s23, 1
      %s29 = ssub.s32 %s23, 2
      %s30 = sadd.s32 %s23, 1
      %s31 = ssub.s32 %s23, %s30
      %p32 = scmp.eq.s32.totalorder %s31, 0
      %s34 = sadd.s32 %s33, 1
      %s35 = scalar_select %p32, %s33, %s34
      %p38 = pneg %p32
      %p39 = scmp.eq.s32.totalorder %s23, 3
      %p40 = por %p38, %p39
      %p41 = scmp.ne.s32.totalorder %s33, %s36
      %p42 = scmp.eq.s32.totalorder %s23, 0
      %p43 = por %p41, %p42
      %p44 = scmp.ne.s32.totalorder %s33, %s36
      %p45 = scmp.eq.s32.totalorder %s28, 3
      %p46 = por %p44, %p45
      %p47 = scmp.ne.s32.totalorder %s36, %s37
      %p48 = scmp.eq.s32.totalorder %s28, 0
      %p49 = por %p47, %p48
      %p50 = scmp.ne.s32.totalorder %s36, %s37
      %p51 = scmp.eq.s32.totalorder %s29, 3
      %p52 = por %p50, %p51
      %p54 = scmp.ne.s32.totalorder %s37, %s53
      %p55 = scmp.eq.s32.totalorder %s29, 0
      %p56 = por %p54, %p55
      %s58 = sadd.s32 %s57, 1
      %p61 = scmp.eq.s32.totalorder %s23, 3
      %p62 = scmp.ne.s32.totalorder %s57, %s59
      %p63 = scmp.eq.s32.totalorder %s23, 0
      %p64 = por %p62, %p63
      %p65 = scmp.ne.s32.totalorder %s57, %s59
      %p66 = scmp.eq.s32.totalorder %s28, 3
      %p67 = por %p65, %p66
      %p68 = scmp.ne.s32.totalorder %s59, %s60
      %p69 = scmp.eq.s32.totalorder %s28, 0
      %p70 = por %p68, %p69
      %p71 = scmp.ne.s32.totalorder %s59, %s60
      %p72 = scmp.eq.s32.totalorder %s29, 3
      %p73 = por %p71, %p72
      %p75 = scmp.ne.s32.totalorder %s60, %s74
      %p76 = scmp.eq.s32.totalorder %s29, 0
      %p77 = por %p75, %p76
      %s79 = sadd.s32 %s78, 1
      %p82 = scmp.eq.s32.totalorder %s23, 3
      %p83 = scmp.ne.s32.totalorder %s78, %s80
      %p84 = scmp.eq.s32.totalorder %s23, 0
      %p85 = por %p83, %p84
      %p86 = scmp.ne.s32.totalorder %s78, %s80
      %p87 = scmp.eq.s32.totalorder %s28, 3
      %p88 = por %p86, %p87
      %p89 = scmp.ne.s32.totalorder %s80, %s81
      %p90 = scmp.eq.s32.totalorder %s28, 0
      %p91 = por %p89, %p90
      %p92 = scmp.ne.s32.totalorder %s80, %s81
      %p93 = scmp.eq.s32.totalorder %s29, 3
      %p94 = por %p92, %p93
      %p96 = scmp.ne.s32.totalorder %s81, %s95
      %p97 = scmp.eq.s32.totalorder %s29, 0
      %p98 = por %p96, %p97
      %s100 = sadd.s32 %s99, 1
      %p103 = scmp.eq.s32.totalorder %s23, 3
      %p104 = scmp.ne.s32.totalorder %s99, %s101
      %p105 = scmp.eq.s32.totalorder %s23, 0
      %p106 = por %p104, %p105
      %p107 = scmp.ne.s32.totalorder %s99, %s101
      %p108 = scmp.eq.s32.totalorder %s28, 3
      %p109 = por %p107, %p108
      %p110 = scmp.ne.s32.totalorder %s101, %s102
      %p111 = scmp.eq.s32.totalorder %s28, 0
      %p112 = por %p110, %p111
      %p113 = scmp.ne.s32.totalorder %s101, %s102
      %p114 = scmp.eq.s32.totalorder %s29, 3
      %p115 = por %p113, %p114
      %p117 = scmp.ne.s32.totalorder %s102, %s116
      %p118 = scmp.eq.s32.totalorder %s29, 0
      %p119 = por %p117, %p118
      %s121 = sadd.s32 %s120, 1
      %p124 = scmp.eq.s32.totalorder %s23, 3
      %p125 = scmp.ne.s32.totalorder %s120, %s122
      %p126 = scmp.eq.s32.totalorder %s23, 0
      %p127 = por %p125, %p126
      %p128 = scmp.ne.s32.totalorder %s120, %s122
      %p129 = scmp.eq.s32.totalorder %s28, 3
      %p130 = por %p128, %p129
      %p131 = scmp.ne.s32.totalorder %s122, %s123
      %p132 = scmp.eq.s32.totalorder %s28, 0
      %p133 = por %p131, %p132
      %p134 = scmp.ne.s32.totalorder %s122, %s123
      %p135 = scmp.eq.s32.totalorder %s29, 3
      %p136 = por %p134, %p135
      %p138 = scmp.ne.s32.totalorder %s123, %s137
      %p139 = scmp.eq.s32.totalorder %s29, 0
      %p140 = por %p138, %p139
      %s142 = sadd.s32 %s141, 1
      %p145 = scmp.eq.s32.totalorder %s23, 3
      %p146 = scmp.ne.s32.totalorder %s141, %s143
      %p147 = scmp.eq.s32.totalorder %s23, 0
      %p148 = por %p146, %p147
      %p149 = scmp.ne.s32.totalorder %s141, %s143
      %p150 = scmp.eq.s32.totalorder %s28, 3
      %p151 = por %p149, %p150
      %p152 = scmp.ne.s32.totalorder %s143, %s144
      %p153 = scmp.eq.s32.totalorder %s28, 0
      %p154 = por %p152, %p153
      %p155 = scmp.ne.s32.totalorder %s143, %s144
      %p156 = scmp.eq.s32.totalorder %s29, 3
      %p157 = por %p155, %p156
      %p159 = scmp.ne.s32.totalorder %s144, %s158
      %p160 = scmp.eq.s32.totalorder %s29, 0
      %p161 = por %p159, %p160
      %s163 = sadd.s32 %s162, 1
      %p166 = scmp.eq.s32.totalorder %s23, 3
      %p167 = scmp.ne.s32.totalorder %s162, %s164
      %p168 = scmp.eq.s32.totalorder %s23, 0
      %p169 = por %p167, %p168
      %p170 = scmp.ne.s32.totalorder %s162, %s164
      %p171 = scmp.eq.s32.totalorder %s28, 3
      %p172 = por %p170, %p171
      %p173 = scmp.ne.s32.totalorder %s164, %s165
      %p174 = scmp.eq.s32.totalorder %s28, 0
      %p175 = por %p173, %p174
      %p176 = scmp.ne.s32.totalorder %s164, %s165
      %p177 = scmp.eq.s32.totalorder %s29, 3
      %p178 = por %p176, %p177
      %p180 = scmp.ne.s32.totalorder %s165, %s179
      %p181 = scmp.eq.s32.totalorder %s29, 0
      %p182 = por %p180, %p181
      %s184 = sadd.s32 %s183, 1
      %p187 = scmp.eq.s32.totalorder %s23, 3
      %p188 = scmp.ne.s32.totalorder %s183, %s185
      %p189 = scmp.eq.s32.totalorder %s23, 0
      %p190 = por %p188, %p189
      %p191 = scmp.ne.s32.totalorder %s183, %s185
      %p192 = scmp.eq.s32.totalorder %s28, 3
      %p193 = por %p191, %p192
      %p194 = scmp.ne.s32.totalorder %s185, %s186
      %p195 = scmp.eq.s32.totalorder %s28, 0
      %p196 = por %p194, %p195
      %p197 = scmp.ne.s32.totalorder %s185, %s186
      %p198 = scmp.eq.s32.totalorder %s29, 3
      %p199 = por %p197, %p198
      %p201 = scmp.ne.s32.totalorder %s186, %s200
      %p202 = scmp.eq.s32.totalorder %s29, 0
      %p203 = por %p201, %p202
      %s205 = sadd.s32 %s204, 1
      %p208 = scmp.eq.s32.totalorder %s23, 3
      %p209 = scmp.ne.s32.totalorder %s204, %s206
      %p210 = scmp.eq.s32.totalorder %s23, 0
      %p211 = por %p209, %p210
      %p212 = scmp.ne.s32.totalorder %s204, %s206
      %p213 = scmp.eq.s32.totalorder %s28, 3
      %p214 = por %p212, %p213
      %p215 = scmp.ne.s32.totalorder %s206, %s207
      %p216 = scmp.eq.s32.totalorder %s28, 0
      %p217 = por %p215, %p216
      %p218 = scmp.ne.s32.totalorder %s206, %s207
      %p219 = scmp.eq.s32.totalorder %s29, 3
      %p220 = por %p218, %p219
      %p222 = scmp.ne.s32.totalorder %s207, %s221
      %p223 = scmp.eq.s32.totalorder %s29, 0
      %p224 = por %p222, %p223
      %s225 = ssub.s32 %s23, %s30
      %p226 = scmp.eq.s32.totalorder %s225, 0
      %s228 = sadd.s32 %s227, 1
      %s229 = scalar_select %p226, %s227, %s228
      %p232 = pneg %p226
      %p233 = scmp.eq.s32.totalorder %s23, 3
      %p234 = por %p232, %p233
      %p235 = scmp.ne.s32.totalorder %s227, %s230
      %p236 = scmp.eq.s32.totalorder %s23, 0
      %p237 = por %p235, %p236
      %p238 = scmp.ne.s32.totalorder %s227, %s230
      %p239 = scmp.eq.s32.totalorder %s28, 3
      %p240 = por %p238, %p239
      %p241 = scmp.ne.s32.totalorder %s230, %s231
      %p242 = scmp.eq.s32.totalorder %s28, 0
      %p243 = por %p241, %p242
      %p244 = scmp.ne.s32.totalorder %s230, %s231
      %p245 = scmp.eq.s32.totalorder %s29, 3
      %p246 = por %p244, %p245
      %p248 = scmp.ne.s32.totalorder %s231, %s247
      %p249 = scmp.eq.s32.totalorder %s29, 0
      %p250 = por %p248, %p249
      %p251 = scmp.le.s32.totalorder 1, %s23
      %p252 = scmp.lt.s32.totalorder %s23, 5
      %p253 = pnand %p251, %p252
      %p254 = pneg %p253
      // Predicated region
      $region9: #{tpu_custom_call.1} parent=5 // pred_check
        _
      $region10: #{tpu_custom_call.1} parent=5 // pred_check_branch
        %256 = sbr.rel (%p253) target = $region12
      $region11: #{tpu_custom_call.1} parent=5 // pred_region
        %s257 = ssub.s32 %s23, 1
        // Predicated region
        $region13: #{tpu_custom_call.1} parent=11 // pred_check
          %p258 = pneg %p70
        $region14: #{tpu_custom_call.1} parent=11 // pred_check_branch
          %260 = sbr.rel (%p258) target = $region16
        $region15: #{tpu_custom_call.1} parent=11 // pred_region
          %s262 = ssub.s32 2048, 2048
          %263 = vsyncadd [#allocation6], %s262
          %s264 = sshll.u32 [#allocation5], 4
          %s265 = int_to_ptr.vmem [resolvable:$true] %s264
          %270 = dma.hbm_to_vmem [thread:$0]  %s1, 2048, %s265, [#allocation6], 128, 128, 8
        $region16: #{tpu_custom_call.1} parent=11 // pred_fallthru
          _
        // Predicated region
        $region17: #{tpu_custom_call.1} parent=11 // pred_check
          %p271 = pneg %p91
        $region18: #{tpu_custom_call.1} parent=11 // pred_check_branch
          %273 = sbr.rel (%p271) target = $region20
        $region19: #{tpu_custom_call.1} parent=11 // pred_region
          _
        $region20: #{tpu_custom_call.1} parent=11 // pred_fallthru
          _
        // Predicated region
        $region21: #{tpu_custom_call.1} parent=11 // pred_check
          %p274 = pneg %p112
        $region22: #{tpu_custom_call.1} parent=11 // pred_check_branch
          %276 = sbr.rel (%p274) target = $region24
        $region23: #{tpu_custom_call.1} parent=11 // pred_region
          %s278 = ssub.s32 2048, 2048
          %279 = vsyncadd [#allocation6], %s278
          %s280 = sshll.u32 [#allocation7], 4
          %s281 = int_to_ptr.vmem [resolvable:$true] %s280
          %286 = dma.hbm_to_vmem [thread:$0]  %s3, 2048, %s281, [#allocation6], 128, 128, 8
        $region24: #{tpu_custom_call.1} parent=11 // pred_fallthru
          _
        // Predicated region
        $region25: #{tpu_custom_call.1} parent=11 // pred_check
          %p287 = pneg %p133
        $region26: #{tpu_custom_call.1} parent=11 // pred_check_branch
          %289 = sbr.rel (%p287) target = $region28
        $region27: #{tpu_custom_call.1} parent=11 // pred_region
          %s291 = ssub.s32 2048, 2048
          %292 = vsyncadd [#allocation9], %s291
          %s293 = sshll.u32 [#allocation8], 4
          %s294 = int_to_ptr.vmem [resolvable:$true] %s293
          %299 = dma.hbm_to_vmem [thread:$0]  %s4, 2048, %s294, [#allocation9], 128, 128, 8
        $region28: #{tpu_custom_call.1} parent=11 // pred_fallthru
          _
        // Predicated region
        $region29: #{tpu_custom_call.1} parent=11 // pred_check
          %p300 = pneg %p154
        $region30: #{tpu_custom_call.1} parent=11 // pred_check_branch
          %302 = sbr.rel (%p300) target = $region32
        $region31: #{tpu_custom_call.1} parent=11 // pred_region
          %s304 = ssub.s32 2048, 2048
          %305 = vsyncadd [#allocation9], %s304
          %s306 = sshll.u32 [#allocation10], 4
          %s307 = int_to_ptr.vmem [resolvable:$true] %s306
          %312 = dma.hbm_to_vmem [thread:$0]  %s5, 2048, %s307, [#allocation9], 128, 128, 8
        $region32: #{tpu_custom_call.1} parent=11 // pred_fallthru
          _
        // Predicated region
        $region33: #{tpu_custom_call.1} parent=11 // pred_check
          %p313 = pneg %p175
        $region34: #{tpu_custom_call.1} parent=11 // pred_check_branch
          %315 = sbr.rel (%p313) target = $region36
        $region35: #{tpu_custom_call.1} parent=11 // pred_region
          _
        $region36: #{tpu_custom_call.1} parent=11 // pred_fallthru
          _
        // Predicated region
        $region37: #{tpu_custom_call.1} parent=11 // pred_check
          %p316 = pneg %p196
        $region38: #{tpu_custom_call.1} parent=11 // pred_check_branch
          %318 = sbr.rel (%p316) target = $region40
        $region39: #{tpu_custom_call.1} parent=11 // pred_region
          _
        $region40: #{tpu_custom_call.1} parent=11 // pred_fallthru
          _
        // Predicated region
        $region41: #{tpu_custom_call.1} parent=11 // pred_check
          %p319 = pneg %p217
        $region42: #{tpu_custom_call.1} parent=11 // pred_check_branch
          %321 = sbr.rel (%p319) target = $region44
        $region43: #{tpu_custom_call.1} parent=11 // pred_region
          _
        $region44: #{tpu_custom_call.1} parent=11 // pred_fallthru
          _
      $region12: #{tpu_custom_call.1} parent=5 // pred_fallthru
        _
      %p322 = scmp.lt.s32.totalorder %s23, 4
      // Predicated region
      $region45: #{tpu_custom_call.1} parent=5 // pred_check
        %p323 = pneg %p322
      $region46: #{tpu_custom_call.1} parent=5 // pred_check_branch
        %325 = sbr.rel (%p323) target = $region48
      $region47: #{tpu_custom_call.1} parent=5 // pred_region
        // Predicated region
        $region49: #{tpu_custom_call.1} parent=47 // pred_check
          %p326 = pneg %p43
        $region50: #{tpu_custom_call.1} parent=47 // pred_check_branch
          %328 = sbr.rel (%p326) target = $region52
        $region51: #{tpu_custom_call.1} parent=47 // pred_region
          %s329 = sand.u32 %s33, 1
          %s330 = scalar_lea.sflag [#allocation3], %s329
          %s331 = sand.u32 %s33, 1
          %s332 = smul.addr %s331, 128
          %s333 = scalar_lea.vmem [#allocation2], %s332
          %s334 = smul.u32 16, %s23
          %s336 = ssub.s32 2048, 2048
          %337 = vsyncadd %s330, %s336
          %s338 = smul.addr %s334, 128
          %s339 = scalar_lea.hbm %s0, %s338
          %s340 = sshll.u32 %s333, 4
          %s341 = int_to_ptr.vmem [resolvable:$true] %s340
          %346 = dma.hbm_to_vmem [thread:$0]  %s339, 2048, %s341, %s330, 128, 128, 8
        $region52: #{tpu_custom_call.1} parent=47 // pred_fallthru
          _
      $region48: #{tpu_custom_call.1} parent=5 // pred_fallthru
        _
      %p347 = scmp.le.s32.totalorder 1, %s23
      %p348 = scmp.lt.s32.totalorder %s23, 5
      %p349 = pnand %p347, %p348
      %p350 = pneg %p349
      // Predicated region
      $region53: #{tpu_custom_call.1} parent=5 // pred_check
        _
      $region54: #{tpu_custom_call.1} parent=5 // pred_check_branch
        %352 = sbr.rel (%p349) target = $region56
      $region55: #{tpu_custom_call.1} parent=5 // pred_region
        %s353 = ssub.s32 %s23, 1
        %s354 = sand.u32 %s36, 1
        %s355 = scalar_lea.sflag [#allocation3], %s354
        %s356 = sand.u32 %s36, 1
        %s357 = smul.addr %s356, 128
        %s358 = scalar_lea.vmem [#allocation2], %s357
        // Predicated region
        $region57: #{tpu_custom_call.1} parent=55 // pred_check
          %p359 = pneg %p49
        $region58: #{tpu_custom_call.1} parent=55 // pred_check_branch
          %361 = sbr.rel (%p359) target = $region60
        $region59: #{tpu_custom_call.1} parent=55 // pred_region
          %362 = dma.done %s355, 2048
        $region60: #{tpu_custom_call.1} parent=55 // pred_fallthru
          _
        // Predicated region
        $region61: #{tpu_custom_call.1} parent=55 // pred_check
          %p363 = pneg %p70
        $region62: #{tpu_custom_call.1} parent=55 // pred_check_branch
          %365 = sbr.rel (%p363) target = $region64
        $region63: #{tpu_custom_call.1} parent=55 // pred_region
          %366 = dma.done [#allocation6], 2048
        $region64: #{tpu_custom_call.1} parent=55 // pred_fallthru
          _
        // Predicated region
        $region65: #{tpu_custom_call.1} parent=55 // pred_check
          %p367 = pneg %p112
        $region66: #{tpu_custom_call.1} parent=55 // pred_check_branch
          %369 = sbr.rel (%p367) target = $region68
        $region67: #{tpu_custom_call.1} parent=55 // pred_region
          %370 = dma.done [#allocation6], 2048
        $region68: #{tpu_custom_call.1} parent=55 // pred_fallthru
          _
        // Predicated region
        $region69: #{tpu_custom_call.1} parent=55 // pred_check
          %p371 = pneg %p133
        $region70: #{tpu_custom_call.1} parent=55 // pred_check_branch
          %373 = sbr.rel (%p371) target = $region72
        $region71: #{tpu_custom_call.1} parent=55 // pred_region
          %374 = dma.done [#allocation9], 2048
        $region72: #{tpu_custom_call.1} parent=55 // pred_fallthru
          _
        // Predicated region
        $region73: #{tpu_custom_call.1} parent=55 // pred_check
          %p375 = pneg %p154
        $region74: #{tpu_custom_call.1} parent=55 // pred_check_branch
          %377 = sbr.rel (%p375) target = $region76
        $region75: #{tpu_custom_call.1} parent=55 // pred_region
          %378 = dma.done [#allocation9], 2048
        $region76: #{tpu_custom_call.1} parent=55 // pred_fallthru
          _
        %s379 = sand.u32 %s36, 1
        %s380 = scalar_lea.sflag [#allocation3], %s379
        %s381 = sand.u32 %s36, 1
        %s382 = smul.addr %s381, 128
        %s383 = scalar_lea.vmem [#allocation2], %s382
        %p384 = pneg %p49
        %p385 = pneg %p46
        %p386 = pneg %p70
        %p387 = pneg %p67
        %p388 = pneg %p91
        %p389 = pneg %p88
        %p390 = pneg %p112
        %p391 = pneg %p109
        %p392 = pneg %p133
        %p393 = pneg %p130
        %p394 = pneg %p154
        %p395 = pneg %p151
        %p396 = pneg %p175
        %p397 = pneg %p172
        %p398 = pneg %p196
        %p399 = pneg %p193
        %p400 = pneg %p217
        %p401 = pneg %p214
        %p402 = pneg %p243
        %p403 = pneg %p240
        %s404 = sand.u32 %s230, 1
        %s405 = scalar_lea.sflag [#allocation4], %s404
        %s406 = sand.u32 %s230, 1
        %s407 = smul.addr %s406, 128
        %s408 = scalar_lea.vmem [#allocation11], %s407
        %s409 = smul.u32 16, %s28
        %s410 = smul.u32 16, %s28
        %v411 = vld [vmem:[%s358] sm:$0xff]
        %v412 = vld [vmem:[%s358 + $0x8] sm:$0xff]
        %v413 = vld [vmem:[%s358 + $0x10] sm:$0xff]
        %v414 = vld [vmem:[%s358 + $0x18] sm:$0xff]
        %v415 = vld [vmem:[%s358 + $0x20] sm:$0xff]
        %v416 = vld [vmem:[%s358 + $0x28] sm:$0xff]
        %v417 = vld [vmem:[%s358 + $0x30] sm:$0xff]
        %v418 = vld [vmem:[%s358 + $0x38] sm:$0xff]
        %v419 = vld [vmem:[%s358 + $0x40] sm:$0xff]
        %v420 = vld [vmem:[%s358 + $0x48] sm:$0xff]
        %v421 = vld [vmem:[%s358 + $0x50] sm:$0xff]
        %v422 = vld [vmem:[%s358 + $0x58] sm:$0xff]
        %v423 = vld [vmem:[%s358 + $0x60] sm:$0xff]
        %v424 = vld [vmem:[%s358 + $0x68] sm:$0xff]
        %v425 = vld [vmem:[%s358 + $0x70] sm:$0xff]
        %v426 = vld [vmem:[%s358 + $0x78] sm:$0xff]
        %v427 = vld [vmem:[#allocation5] sm:$0xff]
        %v428 = vld [vmem:[#allocation5 + $0x8] sm:$0xff]
        %v429 = vld [vmem:[#allocation5 + $0x10] sm:$0xff]
        %v430 = vld [vmem:[#allocation5 + $0x18] sm:$0xff]
        %v431 = vld [vmem:[#allocation5 + $0x20] sm:$0xff]
        %v432 = vld [vmem:[#allocation5 + $0x28] sm:$0xff]
        %v433 = vld [vmem:[#allocation5 + $0x30] sm:$0xff]
        %v434 = vld [vmem:[#allocation5 + $0x38] sm:$0xff]
        %v435 = vld [vmem:[#allocation5 + $0x40] sm:$0xff]
        %v436 = vld [vmem:[#allocation5 + $0x48] sm:$0xff]
        %v437 = vld [vmem:[#allocation5 + $0x50] sm:$0xff]
        %v438 = vld [vmem:[#allocation5 + $0x58] sm:$0xff]
        %v439 = vld [vmem:[#allocation5 + $0x60] sm:$0xff]
        %v440 = vld [vmem:[#allocation5 + $0x68] sm:$0xff]
        %v441 = vld [vmem:[#allocation5 + $0x70] sm:$0xff]
        %v442 = vld [vmem:[#allocation5 + $0x78] sm:$0xff]
        %v443 = vld [vmem:[%s2] sm:$0x1]
        %v445 = vlaneseq
        %v446 = vshrl.u32 %v445, 7
        %v447 = vsub.s32 0, %v446
        %v448 = vrot.slane %v443, %v447
        %450 = vmatprep.subr.mxu0 0.0
        %451 = vmatpush1.msra.mxu0 %v427
        %452 = vmatprep.subr.mxu0 0.0
        %453 = vmatpush1.msra.mxu0 %v428
        %454 = vmatprep.subr.mxu0 0.0
        %455 = vmatpush1.msra.mxu0 %v429
        %456 = vmatprep.subr.mxu0 0.0
        %457 = vmatpush1.msra.mxu0 %v430
        %458 = vmatprep.subr.mxu0 0.0
        %459 = vmatpush1.msra.mxu0 %v431
        %460 = vmatprep.subr.mxu0 0.0
        %461 = vmatpush1.msra.mxu0 %v432
        %462 = vmatprep.subr.mxu0 0.0
        %463 = vmatpush1.msra.mxu0 %v433
        %464 = vmatprep.subr.mxu0 0.0
        %465 = vmatpush1.msra.mxu0 %v434
        %466 = vmatprep.subr.mxu0 0.0
        %467 = vmatpush1.msra.mxu0 %v435
        %468 = vmatprep.subr.mxu0 0.0
        %469 = vmatpush1.msra.mxu0 %v436
        %470 = vmatprep.subr.mxu0 0.0
        %471 = vmatpush1.msra.mxu0 %v437
        %472 = vmatprep.subr.mxu0 0.0
        %473 = vmatpush1.msra.mxu0 %v438
        %474 = vmatprep.subr.mxu0 0.0
        %475 = vmatpush1.msra.mxu0 %v439
        %476 = vmatprep.subr.mxu0 0.0
        %477 = vmatpush1.msra.mxu0 %v440
        %478 = vmatprep.subr.mxu0 0.0
        %479 = vmatpush1.msra.mxu0 %v441
        %480 = vmatprep.subr.mxu0 0.0
        %481 = vmatpush1.msra.mxu0 %v442
        %482 = vmatprep.subr.mxu0 0.0
        %483 = vmatpush1.msra.mxu0 0.0
        %484 = vmatprep.subr.mxu0 0.0
        %485 = vmatpush1.msra.mxu0 0.0
        %486 = vmatprep.subr.mxu0 0.0
        %487 = vmatpush1.msra.mxu0 0.0
        %488 = vmatprep.subr.mxu0 0.0
        %489 = vmatpush1.msra.mxu0 0.0
        %490 = vmatprep.subr.mxu0 0.0
        %491 = vmatpush1.msra.mxu0 0.0
        %492 = vmatprep.subr.mxu0 0.0
        %493 = vmatpush1.msra.mxu0 0.0
        %494 = vmatprep.subr.mxu0 0.0
        %495 = vmatpush1.msra.mxu0 0.0
        %496 = vmatprep.subr.mxu0 0.0
        %497 = vmatpush1.msra.mxu0 0.0
        %498 = vmatprep.subr.mxu0 0.0
        %499 = vmatpush1.msra.mxu0 0.0
        %500 = vmatprep.subr.mxu0 0.0
        %501 = vmatpush1.msra.mxu0 0.0
        %502 = vmatprep.subr.mxu0 0.0
        %503 = vmatpush1.msra.mxu0 0.0
        %504 = vmatprep.subr.mxu0 0.0
        %505 = vmatpush1.msra.mxu0 0.0
        %506 = vmatprep.subr.mxu0 0.0
        %507 = vmatpush1.msra.mxu0 0.0
        %508 = vmatprep.subr.mxu0 0.0
        %509 = vmatpush1.msra.mxu0 0.0
        %510 = vmatprep.subr.mxu0 0.0
        %511 = vmatpush1.msra.mxu0 0.0
        %512 = vmatprep.subr.mxu0 0.0
        %513 = vmatpush1.msra.mxu0 0.0
        %514 = vmatprep.mubr.f32.mxu0 0.0
        %515 = vmatmul.mubr.f32.gmra.mrb[0].mxu0 %v411
        %v516 = vpop.f32.mrb[0].mxu0
        %v517 = vadd.f32 %v448, %v516
        %v518 = vpop.f32.mrb[0].mxu0
        %519 = vmatprep.mubr.f32.mxu0 0.0
        %520 = vmatmul.mubr.f32.gmra.mrb[0].mxu0 %v412
        %v521 = vpop.f32.mrb[0].mxu0
        %v522 = vadd.f32 %v448, %v521
        %v523 = vpop.f32.mrb[0].mxu0
        %524 = vmatprep.mubr.f32.mxu0 0.0
        %525 = vmatmul.mubr.f32.gmra.mrb[0].mxu0 %v413
        %v526 = vpop.f32.mrb[0].mxu0
        %v527 = vadd.f32 %v448, %v526
        %v528 = vpop.f32.mrb[0].mxu0
        %529 = vmatprep.mubr.f32.mxu0 0.0
        %530 = vmatmul.mubr.f32.gmra.mrb[0].mxu0 %v414
        %v531 = vpop.f32.mrb[0].mxu0
        %v532 = vadd.f32 %v448, %v531
        %v533 = vpop.f32.mrb[0].mxu0
        %534 = vmatprep.mubr.f32.mxu0 0.0
        %535 = vmatmul.mubr.f32.gmra.mrb[0].mxu0 %v415
        %v536 = vpop.f32.mrb[0].mxu0
        %v537 = vadd.f32 %v448, %v536
        %v538 = vpop.f32.mrb[0].mxu0
        %539 = vmatprep.mubr.f32.mxu0 0.0
        %540 = vmatmul.mubr.f32.gmra.mrb[0].mxu0 %v416
        %v541 = vpop.f32.mrb[0].mxu0
        %v542 = vadd.f32 %v448, %v541
        %v543 = vpop.f32.mrb[0].mxu0
        %544 = vmatprep.mubr.f32.mxu0 0.0
        %545 = vmatmul.mubr.f32.gmra.mrb[0].mxu0 %v417
        %v546 = vpop.f32.mrb[0].mxu0
        %v547 = vadd.f32 %v448, %v546
        %v548 = vpop.f32.mrb[0].mxu0
        %549 = vmatprep.mubr.f32.mxu0 0.0
        %550 = vmatmul.mubr.f32.gmra.mrb[0].mxu0 %v418
        %v551 = vpop.f32.mrb[0].mxu0
        %v552 = vadd.f32 %v448, %v551
        %v553 = vpop.f32.mrb[0].mxu0
        %554 = vmatprep.mubr.f32.mxu0 0.0
        %555 = vmatmul.mubr.f32.gmra.mrb[0].mxu0 %v419
        %v556 = vpop.f32.mrb[0].mxu0
        %v557 = vadd.f32 %v448, %v556
        %v558 = vpop.f32.mrb[0].mxu0
        %559 = vmatprep.mubr.f32.mxu0 0.0
        %560 = vmatmul.mubr.f32.gmra.mrb[0].mxu0 %v420
        %v561 = vpop.f32.mrb[0].mxu0
        %v562 = vadd.f32 %v448, %v561
        %v563 = vpop.f32.mrb[0].mxu0
        %564 = vmatprep.mubr.f32.mxu0 0.0
        %565 = vmatmul.mubr.f32.gmra.mrb[0].mxu0 %v421
        %v566 = vpop.f32.mrb[0].mxu0
        %v567 = vadd.f32 %v448, %v566
        %v568 = vpop.f32.mrb[0].mxu0
        %569 = vmatprep.mubr.f32.mxu0 0.0
        %570 = vmatmul.mubr.f32.gmra.mrb[0].mxu0 %v422
        %v571 = vpop.f32.mrb[0].mxu0
        %v572 = vadd.f32 %v448, %v571
        %v573 = vpop.f32.mrb[0].mxu0
        %574 = vmatprep.mubr.f32.mxu0 0.0
        %575 = vmatmul.mubr.f32.gmra.mrb[0].mxu0 %v423
        %v576 = vpop.f32.mrb[0].mxu0
        %v577 = vadd.f32 %v448, %v576
        %v578 = vpop.f32.mrb[0].mxu0
        %579 = vmatprep.mubr.f32.mxu0 0.0
        %580 = vmatmul.mubr.f32.gmra.mrb[0].mxu0 %v424
        %v581 = vpop.f32.mrb[0].mxu0
        %v582 = vadd.f32 %v448, %v581
        %v583 = vpop.f32.mrb[0].mxu0
        %584 = vmatprep.mubr.f32.mxu0 0.0
        %585 = vmatmul.mubr.f32.gmra.mrb[0].mxu0 %v425
        %v586 = vpop.f32.mrb[0].mxu0
        %v587 = vadd.f32 %v448, %v586
        %v588 = vpop.f32.mrb[0].mxu0
        %589 = vmatprep.mubr.f32.mxu0 0.0
        %590 = vmatmul.mubr.f32.gmra.mrb[0].mxu0 %v426
        %v591 = vpop.f32.mrb[0].mxu0
        %v592 = vadd.f32 %v448, %v591
        %v593 = vpop.f32.mrb[0].mxu0
        %594 = vdwg.mxu0
        %v595 = vld [vmem:[#allocation7] sm:$0xff]
        %v596 = vld [vmem:[#allocation7 + $0x8] sm:$0xff]
        %v597 = vld [vmem:[#allocation7 + $0x10] sm:$0xff]
        %v598 = vld [vmem:[#allocation7 + $0x18] sm:$0xff]
        %v599 = vld [vmem:[#allocation7 + $0x20] sm:$0xff]
        %v600 = vld [vmem:[#allocation7 + $0x28] sm:$0xff]
        %v601 = vld [vmem:[#allocation7 + $0x30] sm:$0xff]
        %v602 = vld [vmem:[#allocation7 + $0x38] sm:$0xff]
        %v603 = vld [vmem:[#allocation7 + $0x40] sm:$0xff]
        %v604 = vld [vmem:[#allocation7 + $0x48] sm:$0xff]
        %v605 = vld [vmem:[#allocation7 + $0x50] sm:$0xff]
        %v606 = vld [vmem:[#allocation7 + $0x58] sm:$0xff]
        %v607 = vld [vmem:[#allocation7 + $0x60] sm:$0xff]
        %v608 = vld [vmem:[#allocation7 + $0x68] sm:$0xff]
        %v609 = vld [vmem:[#allocation7 + $0x70] sm:$0xff]
        %v610 = vld [vmem:[#allocation7 + $0x78] sm:$0xff]
        %611 = vmatprep.subr.mxu0 0.0
        %612 = vmatpush1.msra.mxu0 %v595
        %613 = vmatprep.subr.mxu0 0.0
        %614 = vmatpush1.msra.mxu0 %v596
        %615 = vmatprep.subr.mxu0 0.0
        %616 = vmatpush1.msra.mxu0 %v597
        %617 = vmatprep.subr.mxu0 0.0
        %618 = vmatpush1.msra.mxu0 %v598
        %619 = vmatprep.subr.mxu0 0.0
        %620 = vmatpush1.msra.mxu0 %v599
        %621 = vmatprep.subr.mxu0 0.0
        %622 = vmatpush1.msra.mxu0 %v600
        %623 = vmatprep.subr.mxu0 0.0
        %624 = vmatpush1.msra.mxu0 %v601
        %625 = vmatprep.subr.mxu0 0.0
        %626 = vmatpush1.msra.mxu0 %v602
        %627 = vmatprep.subr.mxu0 0.0
        %628 = vmatpush1.msra.mxu0 %v603
        %629 = vmatprep.subr.mxu0 0.0
        %630 = vmatpush1.msra.mxu0 %v604
        %631 = vmatprep.subr.mxu0 0.0
        %632 = vmatpush1.msra.mxu0 %v605
        %633 = vmatprep.subr.mxu0 0.0
        %634 = vmatpush1.msra.mxu0 %v606
        %635 = vmatprep.subr.mxu0 0.0
        %636 = vmatpush1.msra.mxu0 %v607
        %637 = vmatprep.subr.mxu0 0.0
        %638 = vmatpush1.msra.mxu0 %v608
        %639 = vmatprep.subr.mxu0 0.0
        %640 = vmatpush1.msra.mxu0 %v609
        %641 = vmatprep.subr.mxu0 0.0
        %642 = vmatpush1.msra.mxu0 %v610
        %643 = vmatprep.subr.mxu0 0.0
        %644 = vmatpush1.msra.mxu0 0.0
        %645 = vmatprep.subr.mxu0 0.0
        %646 = vmatpush1.msra.mxu0 0.0
        %647 = vmatprep.subr.mxu0 0.0
        %648 = vmatpush1.msra.mxu0 0.0
        %649 = vmatprep.subr.mxu0 0.0
        %650 = vmatpush1.msra.mxu0 0.0
        %651 = vmatprep.subr.mxu0 0.0
        %652 = vmatpush1.msra.mxu0 0.0
        %653 = vmatprep.subr.mxu0 0.0
        %654 = vmatpush1.msra.mxu0 0.0
        %655 = vmatprep.subr.mxu0 0.0
        %656 = vmatpush1.msra.mxu0 0.0
        %657 = vmatprep.subr.mxu0 0.0
        %658 = vmatpush1.msra.mxu0 0.0
        %659 = vmatprep.subr.mxu0 0.0
        %660 = vmatpush1.msra.mxu0 0.0
        %661 = vmatprep.subr.mxu0 0.0
        %662 = vmatpush1.msra.mxu0 0.0
        %663 = vmatprep.subr.mxu0 0.0
        %664 = vmatpush1.msra.mxu0 0.0
        %665 = vmatprep.subr.mxu0 0.0
        %666 = vmatpush1.msra.mxu0 0.0
        %667 = vmatprep.subr.mxu0 0.0
        %668 = vmatpush1.msra.mxu0 0.0
        %669 = vmatprep.subr.mxu0 0.0
        %670 = vmatpush1.msra.mxu0 0.0
        %671 = vmatprep.subr.mxu0 0.0
        %672 = vmatpush1.msra.mxu0 0.0
        %673 = vmatprep.subr.mxu0 0.0
        %674 = vmatpush1.msra.mxu0 0.0
        %675 = vmatprep.mubr.f32.mxu0 0.0
        %676 = vmatmul.mubr.f32.gmra.mrb[0].mxu0 %v517
        %v677 = vpop.f32.mrb[0].mxu0
        %v678 = vadd.f32 0.0, %v677
        %v679 = vpop.f32.mrb[0].mxu0
        %680 = vmatprep.mubr.f32.mxu0 0.0
        %681 = vmatmul.mubr.f32.gmra.mrb[0].mxu0 %v522
        %v682 = vpop.f32.mrb[0].mxu0
        %v683 = vadd.f32 0.0, %v682
        %v684 = vpop.f32.mrb[0].mxu0
        %685 = vmatprep.mubr.f32.mxu0 0.0
        %686 = vmatmul.mubr.f32.gmra.mrb[0].mxu0 %v527
        %v687 = vpop.f32.mrb[0].mxu0
        %v688 = vadd.f32 0.0, %v687
        %v689 = vpop.f32.mrb[0].mxu0
        %690 = vmatprep.mubr.f32.mxu0 0.0
        %691 = vmatmul.mubr.f32.gmra.mrb[0].mxu0 %v532
        %v692 = vpop.f32.mrb[0].mxu0
        %v693 = vadd.f32 0.0, %v692
        %v694 = vpop.f32.mrb[0].mxu0
        %695 = vmatprep.mubr.f32.mxu0 0.0
        %696 = vmatmul.mubr.f32.gmra.mrb[0].mxu0 %v537
        %v697 = vpop.f32.mrb[0].mxu0
        %v698 = vadd.f32 0.0, %v697
        %v699 = vpop.f32.mrb[0].mxu0
        %700 = vmatprep.mubr.f32.mxu0 0.0
        %701 = vmatmul.mubr.f32.gmra.mrb[0].mxu0 %v542
        %v702 = vpop.f32.mrb[0].mxu0
        %v703 = vadd.f32 0.0, %v702
        %v704 = vpop.f32.mrb[0].mxu0
        %705 = vmatprep.mubr.f32.mxu0 0.0
        %706 = vmatmul.mubr.f32.gmra.mrb[0].mxu0 %v547
        %v707 = vpop.f32.mrb[0].mxu0
        %v708 = vadd.f32 0.0, %v707
        %v709 = vpop.f32.mrb[0].mxu0
        %710 = vmatprep.mubr.f32.mxu0 0.0
        %711 = vmatmul.mubr.f32.gmra.mrb[0].mxu0 %v552
        %v712 = vpop.f32.mrb[0].mxu0
        %v713 = vadd.f32 0.0, %v712
        %v714 = vpop.f32.mrb[0].mxu0
        %715 = vmatprep.mubr.f32.mxu0 0.0
        %716 = vmatmul.mubr.f32.gmra.mrb[0].mxu0 %v557
        %v717 = vpop.f32.mrb[0].mxu0
        %v718 = vadd.f32 0.0, %v717
        %v719 = vpop.f32.mrb[0].mxu0
        %720 = vmatprep.mubr.f32.mxu0 0.0
        %721 = vmatmul.mubr.f32.gmra.mrb[0].mxu0 %v562
        %v722 = vpop.f32.mrb[0].mxu0
        %v723 = vadd.f32 0.0, %v722
        %v724 = vpop.f32.mrb[0].mxu0
        %725 = vmatprep.mubr.f32.mxu0 0.0
        %726 = vmatmul.mubr.f32.gmra.mrb[0].mxu0 %v567
        %v727 = vpop.f32.mrb[0].mxu0
        %v728 = vadd.f32 0.0, %v727
        %v729 = vpop.f32.mrb[0].mxu0
        %730 = vmatprep.mubr.f32.mxu0 0.0
        %731 = vmatmul.mubr.f32.gmra.mrb[0].mxu0 %v572
        %v732 = vpop.f32.mrb[0].mxu0
        %v733 = vadd.f32 0.0, %v732
        %v734 = vpop.f32.mrb[0].mxu0
        %735 = vmatprep.mubr.f32.mxu0 0.0
        %736 = vmatmul.mubr.f32.gmra.mrb[0].mxu0 %v577
        %v737 = vpop.f32.mrb[0].mxu0
        %v738 = vadd.f32 0.0, %v737
        %v739 = vpop.f32.mrb[0].mxu0
        %740 = vmatprep.mubr.f32.mxu0 0.0
        %741 = vmatmul.mubr.f32.gmra.mrb[0].mxu0 %v582
        %v742 = vpop.f32.mrb[0].mxu0
        %v743 = vadd.f32 0.0, %v742
        %v744 = vpop.f32.mrb[0].mxu0
        %745 = vmatprep.mubr.f32.mxu0 0.0
        %746 = vmatmul.mubr.f32.gmra.mrb[0].mxu0 %v587
        %v747 = vpop.f32.mrb[0].mxu0
        %v748 = vadd.f32 0.0, %v747
        %v749 = vpop.f32.mrb[0].mxu0
        %750 = vmatprep.mubr.f32.mxu0 0.0
        %751 = vmatmul.mubr.f32.gmra.mrb[0].mxu0 %v592
        %v752 = vpop.f32.mrb[0].mxu0
        %v753 = vadd.f32 0.0, %v752
        %v754 = vpop.f32.mrb[0].mxu0
        %755 = vdwg.mxu0
        %756 = vmax.xlane.f32.xlu0 %v678
        %v757 = vpop.xlane.xlu0 %756
        %758 = vmax.xlane.f32.xlu0 %v683
        %v759 = vpop.xlane.xlu0 %758
        %760 = vmax.xlane.f32.xlu0 %v688
        %v761 = vpop.xlane.xlu0 %760
        %762 = vmax.xlane.f32.xlu0 %v693
        %v763 = vpop.xlane.xlu0 %762
        %764 = vmax.xlane.f32.xlu0 %v698
        %v765 = vpop.xlane.xlu0 %764
        %766 = vmax.xlane.f32.xlu0 %v703
        %v767 = vpop.xlane.xlu0 %766
        %768 = vmax.xlane.f32.xlu0 %v708
        %v769 = vpop.xlane.xlu0 %768
        %770 = vmax.xlane.f32.xlu0 %v713
        %v771 = vpop.xlane.xlu0 %770
        %772 = vmax.xlane.f32.xlu0 %v718
        %v773 = vpop.xlane.xlu0 %772
        %774 = vmax.xlane.f32.xlu0 %v723
        %v775 = vpop.xlane.xlu0 %774
        %776 = vmax.xlane.f32.xlu0 %v728
        %v777 = vpop.xlane.xlu0 %776
        %778 = vmax.xlane.f32.xlu0 %v733
        %v779 = vpop.xlane.xlu0 %778
        %780 = vmax.xlane.f32.xlu0 %v738
        %v781 = vpop.xlane.xlu0 %780
        %782 = vmax.xlane.f32.xlu0 %v743
        %v783 = vpop.xlane.xlu0 %782
        %784 = vmax.xlane.f32.xlu0 %v748
        %v785 = vpop.xlane.xlu0 %784
        %786 = vmax.xlane.f32.xlu0 %v753
        %v787 = vpop.xlane.xlu0 %786
        %v788 = vsub.f32 %v678, %v757
        %v789 = vsub.f32 %v683, %v759
        %v790 = vsub.f32 %v688, %v761
        %v791 = vsub.f32 %v693, %v763
        %v792 = vsub.f32 %v698, %v765
        %v793 = vsub.f32 %v703, %v767
        %v794 = vsub.f32 %v708, %v769
        %v795 = vsub.f32 %v713, %v771
        %v796 = vsub.f32 %v718, %v773
        %v797 = vsub.f32 %v723, %v775
        %v798 = vsub.f32 %v728, %v777
        %v799 = vsub.f32 %v733, %v779
        %v800 = vsub.f32 %v738, %v781
        %v801 = vsub.f32 %v743, %v783
        %v802 = vsub.f32 %v748, %v785
        %v803 = vsub.f32 %v753, %v787
        %v804 = vmul.f32 %v788, 1.442695
        %v805 = vpow.pop %v804
        %v806 = vmul.f32 %v789, 1.442695
        %v807 = vpow.pop %v806
        %v808 = vmul.f32 %v790, 1.442695
        %v809 = vpow.pop %v808
        %v810 = vmul.f32 %v791, 1.442695
        %v811 = vpow.pop %v810
        %v812 = vmul.f32 %v792, 1.442695
        %v813 = vpow.pop %v812
        %v814 = vmul.f32 %v793, 1.442695
        %v815 = vpow.pop %v814
        %v816 = vmul.f32 %v794, 1.442695
        %v817 = vpow.pop %v816
        %v818 = vmul.f32 %v795, 1.442695
        %v819 = vpow.pop %v818
        %v820 = vmul.f32 %v796, 1.442695
        %v821 = vpow.pop %v820
        %v822 = vmul.f32 %v797, 1.442695
        %v823 = vpow.pop %v822
        %v824 = vmul.f32 %v798, 1.442695
        %v825 = vpow.pop %v824
        %v826 = vmul.f32 %v799, 1.442695
        %v827 = vpow.pop %v826
        %v828 = vmul.f32 %v800, 1.442695
        %v829 = vpow.pop %v828
        %v830 = vmul.f32 %v801, 1.442695
        %v831 = vpow.pop %v830
        %v832 = vmul.f32 %v802, 1.442695
        %v833 = vpow.pop %v832
        %v834 = vmul.f32 %v803, 1.442695
        %v835 = vpow.pop %v834
        %v836 = vld [vmem:[#allocation8] sm:$0xff]
        %v837 = vld [vmem:[#allocation8 + $0x8] sm:$0xff]
        %v838 = vld [vmem:[#allocation8 + $0x10] sm:$0xff]
        %v839 = vld [vmem:[#allocation8 + $0x18] sm:$0xff]
        %v840 = vld [vmem:[#allocation8 + $0x20] sm:$0xff]
        %v841 = vld [vmem:[#allocation8 + $0x28] sm:$0xff]
        %v842 = vld [vmem:[#allocation8 + $0x30] sm:$0xff]
        %v843 = vld [vmem:[#allocation8 + $0x38] sm:$0xff]
        %v844 = vld [vmem:[#allocation8 + $0x40] sm:$0xff]
        %v845 = vld [vmem:[#allocation8 + $0x48] sm:$0xff]
        %v846 = vld [vmem:[#allocation8 + $0x50] sm:$0xff]
        %v847 = vld [vmem:[#allocation8 + $0x58] sm:$0xff]
        %v848 = vld [vmem:[#allocation8 + $0x60] sm:$0xff]
        %v849 = vld [vmem:[#allocation8 + $0x68] sm:$0xff]
        %v850 = vld [vmem:[#allocation8 + $0x70] sm:$0xff]
        %v851 = vld [vmem:[#allocation8 + $0x78] sm:$0xff]
        %852 = vmatprep.subr.mxu0 0.0
        %853 = vmatpush1.msra.mxu0 %v836
        %854 = vmatprep.subr.mxu0 0.0
        %855 = vmatpush1.msra.mxu0 %v837
        %856 = vmatprep.subr.mxu0 0.0
        %857 = vmatpush1.msra.mxu0 %v838
        %858 = vmatprep.subr.mxu0 0.0
        %859 = vmatpush1.msra.mxu0 %v839
        %860 = vmatprep.subr.mxu0 0.0
        %861 = vmatpush1.msra.mxu0 %v840
        %862 = vmatprep.subr.mxu0 0.0
        %863 = vmatpush1.msra.mxu0 %v841
        %864 = vmatprep.subr.mxu0 0.0
        %865 = vmatpush1.msra.mxu0 %v842
        %866 = vmatprep.subr.mxu0 0.0
        %867 = vmatpush1.msra.mxu0 %v843
        %868 = vmatprep.subr.mxu0 0.0
        %869 = vmatpush1.msra.mxu0 %v844
        %870 = vmatprep.subr.mxu0 0.0
        %871 = vmatpush1.msra.mxu0 %v845
        %872 = vmatprep.subr.mxu0 0.0
        %873 = vmatpush1.msra.mxu0 %v846
        %874 = vmatprep.subr.mxu0 0.0
        %875 = vmatpush1.msra.mxu0 %v847
        %876 = vmatprep.subr.mxu0 0.0
        %877 = vmatpush1.msra.mxu0 %v848
        %878 = vmatprep.subr.mxu0 0.0
        %879 = vmatpush1.msra.mxu0 %v849
        %880 = vmatprep.subr.mxu0 0.0
        %881 = vmatpush1.msra.mxu0 %v850
        %882 = vmatprep.subr.mxu0 0.0
        %883 = vmatpush1.msra.mxu0 %v851
        %884 = vmatprep.subr.mxu0 0.0
        %885 = vmatpush1.msra.mxu0 0.0
        %886 = vmatprep.subr.mxu0 0.0
        %887 = vmatpush1.msra.mxu0 0.0
        %888 = vmatprep.subr.mxu0 0.0
        %889 = vmatpush1.msra.mxu0 0.0
        %890 = vmatprep.subr.mxu0 0.0
        %891 = vmatpush1.msra.mxu0 0.0
        %892 = vmatprep.subr.mxu0 0.0
        %893 = vmatpush1.msra.mxu0 0.0
        %894 = vmatprep.subr.mxu0 0.0
        %895 = vmatpush1.msra.mxu0 0.0
        %896 = vmatprep.subr.mxu0 0.0
        %897 = vmatpush1.msra.mxu0 0.0
        %898 = vmatprep.subr.mxu0 0.0
        %899 = vmatpush1.msra.mxu0 0.0
        %900 = vmatprep.subr.mxu0 0.0
        %901 = vmatpush1.msra.mxu0 0.0
        %902 = vmatprep.subr.mxu0 0.0
        %903 = vmatpush1.msra.mxu0 0.0
        %904 = vmatprep.subr.mxu0 0.0
        %905 = vmatpush1.msra.mxu0 0.0
        %906 = vmatprep.subr.mxu0 0.0
        %907 = vmatpush1.msra.mxu0 0.0
        %908 = vmatprep.subr.mxu0 0.0
        %909 = vmatpush1.msra.mxu0 0.0
        %910 = vmatprep.subr.mxu0 0.0
        %911 = vmatpush1.msra.mxu0 0.0
        %912 = vmatprep.subr.mxu0 0.0
        %913 = vmatpush1.msra.mxu0 0.0
        %914 = vmatprep.subr.mxu0 0.0
        %915 = vmatpush1.msra.mxu0 0.0
        %916 = vmatprep.mubr.f32.mxu0 0.0
        %917 = vmatmul.mubr.f32.gmra.mrb[0].mxu0 %v805
        %v918 = vpop.f32.mrb[0].mxu0
        %v919 = vadd.f32 0.0, %v918
        %v920 = vpop.f32.mrb[0].mxu0
        %921 = vmatprep.mubr.f32.mxu0 0.0
        %922 = vmatmul.mubr.f32.gmra.mrb[0].mxu0 %v807
        %v923 = vpop.f32.mrb[0].mxu0
        %v924 = vadd.f32 0.0, %v923
        %v925 = vpop.f32.mrb[0].mxu0
        %926 = vmatprep.mubr.f32.mxu0 0.0
        %927 = vmatmul.mubr.f32.gmra.mrb[0].mxu0 %v809
        %v928 = vpop.f32.mrb[0].mxu0
        %v929 = vadd.f32 0.0, %v928
        %v930 = vpop.f32.mrb[0].mxu0
        %931 = vmatprep.mubr.f32.mxu0 0.0
        %932 = vmatmul.mubr.f32.gmra.mrb[0].mxu0 %v811
        %v933 = vpop.f32.mrb[0].mxu0
        %v934 = vadd.f32 0.0, %v933
        %v935 = vpop.f32.mrb[0].mxu0
        %936 = vmatprep.mubr.f32.mxu0 0.0
        %937 = vmatmul.mubr.f32.gmra.mrb[0].mxu0 %v813
        %v938 = vpop.f32.mrb[0].mxu0
        %v939 = vadd.f32 0.0, %v938
        %v940 = vpop.f32.mrb[0].mxu0
        %941 = vmatprep.mubr.f32.mxu0 0.0
        %942 = vmatmul.mubr.f32.gmra.mrb[0].mxu0 %v815
        %v943 = vpop.f32.mrb[0].mxu0
        %v944 = vadd.f32 0.0, %v943
        %v945 = vpop.f32.mrb[0].mxu0
        %946 = vmatprep.mubr.f32.mxu0 0.0
        %947 = vmatmul.mubr.f32.gmra.mrb[0].mxu0 %v817
        %v948 = vpop.f32.mrb[0].mxu0
        %v949 = vadd.f32 0.0, %v948
        %v950 = vpop.f32.mrb[0].mxu0
        %951 = vmatprep.mubr.f32.mxu0 0.0
        %952 = vmatmul.mubr.f32.gmra.mrb[0].mxu0 %v819
        %v953 = vpop.f32.mrb[0].mxu0
        %v954 = vadd.f32 0.0, %v953
        %v955 = vpop.f32.mrb[0].mxu0
        %956 = vmatprep.mubr.f32.mxu0 0.0
        %957 = vmatmul.mubr.f32.gmra.mrb[0].mxu0 %v821
        %v958 = vpop.f32.mrb[0].mxu0
        %v959 = vadd.f32 0.0, %v958
        %v960 = vpop.f32.mrb[0].mxu0
        %961 = vmatprep.mubr.f32.mxu0 0.0
        %962 = vmatmul.mubr.f32.gmra.mrb[0].mxu0 %v823
        %v963 = vpop.f32.mrb[0].mxu0
        %v964 = vadd.f32 0.0, %v963
        %v965 = vpop.f32.mrb[0].mxu0
        %966 = vmatprep.mubr.f32.mxu0 0.0
        %967 = vmatmul.mubr.f32.gmra.mrb[0].mxu0 %v825
        %v968 = vpop.f32.mrb[0].mxu0
        %v969 = vadd.f32 0.0, %v968
        %v970 = vpop.f32.mrb[0].mxu0
        %971 = vmatprep.mubr.f32.mxu0 0.0
        %972 = vmatmul.mubr.f32.gmra.mrb[0].mxu0 %v827
        %v973 = vpop.f32.mrb[0].mxu0
        %v974 = vadd.f32 0.0, %v973
        %v975 = vpop.f32.mrb[0].mxu0
        %976 = vmatprep.mubr.f32.mxu0 0.0
        %977 = vmatmul.mubr.f32.gmra.mrb[0].mxu0 %v829
        %v978 = vpop.f32.mrb[0].mxu0
        %v979 = vadd.f32 0.0, %v978
        %v980 = vpop.f32.mrb[0].mxu0
        %981 = vmatprep.mubr.f32.mxu0 0.0
        %982 = vmatmul.mubr.f32.gmra.mrb[0].mxu0 %v831
        %v983 = vpop.f32.mrb[0].mxu0
        %v984 = vadd.f32 0.0, %v983
        %v985 = vpop.f32.mrb[0].mxu0
        %986 = vmatprep.mubr.f32.mxu0 0.0
        %987 = vmatmul.mubr.f32.gmra.mrb[0].mxu0 %v833
        %v988 = vpop.f32.mrb[0].mxu0
        %v989 = vadd.f32 0.0, %v988
        %v990 = vpop.f32.mrb[0].mxu0
        %991 = vmatprep.mubr.f32.mxu0 0.0
        %992 = vmatmul.mubr.f32.gmra.mrb[0].mxu0 %v835
        %v993 = vpop.f32.mrb[0].mxu0
        %v994 = vadd.f32 0.0, %v993
        %v995 = vpop.f32.mrb[0].mxu0
        %996 = vdwg.mxu0
        %v997 = vrcp.pop %v919
        %v998 = vrcp.pop %v924
        %v999 = vrcp.pop %v929
        %v1000 = vrcp.pop %v934
        %v1001 = vrcp.pop %v939
        %v1002 = vrcp.pop %v944
        %v1003 = vrcp.pop %v949
        %v1004 = vrcp.pop %v954
        %v1005 = vrcp.pop %v959
        %v1006 = vrcp.pop %v964
        %v1007 = vrcp.pop %v969
        %v1008 = vrcp.pop %v974
        %v1009 = vrcp.pop %v979
        %v1010 = vrcp.pop %v984
        %v1011 = vrcp.pop %v989
        %v1012 = vrcp.pop %v994
        %v1013 = vmul.f32 %v805, %v997
        %v1014 = vmul.f32 %v807, %v998
        %v1015 = vmul.f32 %v809, %v999
        %v1016 = vmul.f32 %v811, %v1000
        %v1017 = vmul.f32 %v813, %v1001
        %v1018 = vmul.f32 %v815, %v1002
        %v1019 = vmul.f32 %v817, %v1003
        %v1020 = vmul.f32 %v819, %v1004
        %v1021 = vmul.f32 %v821, %v1005
        %v1022 = vmul.f32 %v823, %v1006
        %v1023 = vmul.f32 %v825, %v1007
        %v1024 = vmul.f32 %v827, %v1008
        %v1025 = vmul.f32 %v829, %v1009
        %v1026 = vmul.f32 %v831, %v1010
        %v1027 = vmul.f32 %v833, %v1011
        %v1028 = vmul.f32 %v835, %v1012
        %v1029 = vld [vmem:[#allocation10] sm:$0xff]
        %v1030 = vld [vmem:[#allocation10 + $0x8] sm:$0xff]
        %v1031 = vld [vmem:[#allocation10 + $0x10] sm:$0xff]
        %v1032 = vld [vmem:[#allocation10 + $0x18] sm:$0xff]
        %v1033 = vld [vmem:[#allocation10 + $0x20] sm:$0xff]
        %v1034 = vld [vmem:[#allocation10 + $0x28] sm:$0xff]
        %v1035 = vld [vmem:[#allocation10 + $0x30] sm:$0xff]
        %v1036 = vld [vmem:[#allocation10 + $0x38] sm:$0xff]
        %v1037 = vld [vmem:[#allocation10 + $0x40] sm:$0xff]
        %v1038 = vld [vmem:[#allocation10 + $0x48] sm:$0xff]
        %v1039 = vld [vmem:[#allocation10 + $0x50] sm:$0xff]
        %v1040 = vld [vmem:[#allocation10 + $0x58] sm:$0xff]
        %v1041 = vld [vmem:[#allocation10 + $0x60] sm:$0xff]
        %v1042 = vld [vmem:[#allocation10 + $0x68] sm:$0xff]
        %v1043 = vld [vmem:[#allocation10 + $0x70] sm:$0xff]
        %v1044 = vld [vmem:[#allocation10 + $0x78] sm:$0xff]
        %v1045 = vld [vmem:[%s6] sm:$0x1]
        %v1047 = vlaneseq
        %v1048 = vshrl.u32 %v1047, 7
        %v1049 = vsub.s32 0, %v1048
        %v1050 = vrot.slane %v1045, %v1049
        %1052 = vmatprep.subr.mxu0 0.0
        %1053 = vmatpush1.msra.mxu0 %v1029
        %1054 = vmatprep.subr.mxu0 0.0
        %1055 = vmatpush1.msra.mxu0 %v1030
        %1056 = vmatprep.subr.mxu0 0.0
        %1057 = vmatpush1.msra.mxu0 %v1031
        %1058 = vmatprep.subr.mxu0 0.0
        %1059 = vmatpush1.msra.mxu0 %v1032
        %1060 = vmatprep.subr.mxu0 0.0
        %1061 = vmatpush1.msra.mxu0 %v1033
        %1062 = vmatprep.subr.mxu0 0.0
        %1063 = vmatpush1.msra.mxu0 %v1034
        %1064 = vmatprep.subr.mxu0 0.0
        %1065 = vmatpush1.msra.mxu0 %v1035
        %1066 = vmatprep.subr.mxu0 0.0
        %1067 = vmatpush1.msra.mxu0 %v1036
        %1068 = vmatprep.subr.mxu0 0.0
        %1069 = vmatpush1.msra.mxu0 %v1037
        %1070 = vmatprep.subr.mxu0 0.0
        %1071 = vmatpush1.msra.mxu0 %v1038
        %1072 = vmatprep.subr.mxu0 0.0
        %1073 = vmatpush1.msra.mxu0 %v1039
        %1074 = vmatprep.subr.mxu0 0.0
        %1075 = vmatpush1.msra.mxu0 %v1040
        %1076 = vmatprep.subr.mxu0 0.0
        %1077 = vmatpush1.msra.mxu0 %v1041
        %1078 = vmatprep.subr.mxu0 0.0
        %1079 = vmatpush1.msra.mxu0 %v1042
        %1080 = vmatprep.subr.mxu0 0.0
        %1081 = vmatpush1.msra.mxu0 %v1043
        %1082 = vmatprep.subr.mxu0 0.0
        %1083 = vmatpush1.msra.mxu0 %v1044
        %1084 = vmatprep.subr.mxu0 0.0
        %1085 = vmatpush1.msra.mxu0 0.0
        %1086 = vmatprep.subr.mxu0 0.0
        %1087 = vmatpush1.msra.mxu0 0.0
        %1088 = vmatprep.subr.mxu0 0.0
        %1089 = vmatpush1.msra.mxu0 0.0
        %1090 = vmatprep.subr.mxu0 0.0
        %1091 = vmatpush1.msra.mxu0 0.0
        %1092 = vmatprep.subr.mxu0 0.0
        %1093 = vmatpush1.msra.mxu0 0.0
        %1094 = vmatprep.subr.mxu0 0.0
        %1095 = vmatpush1.msra.mxu0 0.0
        %1096 = vmatprep.subr.mxu0 0.0
        %1097 = vmatpush1.msra.mxu0 0.0
        %1098 = vmatprep.subr.mxu0 0.0
        %1099 = vmatpush1.msra.mxu0 0.0
        %1100 = vmatprep.subr.mxu0 0.0
        %1101 = vmatpush1.msra.mxu0 0.0
        %1102 = vmatprep.subr.mxu0 0.0
        %1103 = vmatpush1.msra.mxu0 0.0
        %1104 = vmatprep.subr.mxu0 0.0
        %1105 = vmatpush1.msra.mxu0 0.0
        %1106 = vmatprep.subr.mxu0 0.0
        %1107 = vmatpush1.msra.mxu0 0.0
        %1108 = vmatprep.subr.mxu0 0.0
        %1109 = vmatpush1.msra.mxu0 0.0
        %1110 = vmatprep.subr.mxu0 0.0
        %1111 = vmatpush1.msra.mxu0 0.0
        %1112 = vmatprep.subr.mxu0 0.0
        %1113 = vmatpush1.msra.mxu0 0.0
        %1114 = vmatprep.subr.mxu0 0.0
        %1115 = vmatpush1.msra.mxu0 0.0
        %1116 = vmatprep.mubr.f32.mxu0 0.0
        %1117 = vmatmul.mubr.f32.gmra.mrb[0].mxu0 %v1013
        %v1118 = vpop.f32.mrb[0].mxu0
        %v1119 = vadd.f32 %v1050, %v1118
        %v1120 = vpop.f32.mrb[0].mxu0
        %1121 = vmatprep.mubr.f32.mxu0 0.0
        %1122 = vmatmul.mubr.f32.gmra.mrb[0].mxu0 %v1014
        %v1123 = vpop.f32.mrb[0].mxu0
        %v1124 = vadd.f32 %v1050, %v1123
        %v1125 = vpop.f32.mrb[0].mxu0
        %1126 = vmatprep.mubr.f32.mxu0 0.0
        %1127 = vmatmul.mubr.f32.gmra.mrb[0].mxu0 %v1015
        %v1128 = vpop.f32.mrb[0].mxu0
        %v1129 = vadd.f32 %v1050, %v1128
        %v1130 = vpop.f32.mrb[0].mxu0
        %1131 = vmatprep.mubr.f32.mxu0 0.0
        %1132 = vmatmul.mubr.f32.gmra.mrb[0].mxu0 %v1016
        %v1133 = vpop.f32.mrb[0].mxu0
        %v1134 = vadd.f32 %v1050, %v1133
        %v1135 = vpop.f32.mrb[0].mxu0
        %1136 = vmatprep.mubr.f32.mxu0 0.0
        %1137 = vmatmul.mubr.f32.gmra.mrb[0].mxu0 %v1017
        %v1138 = vpop.f32.mrb[0].mxu0
        %v1139 = vadd.f32 %v1050, %v1138
        %v1140 = vpop.f32.mrb[0].mxu0
        %1141 = vmatprep.mubr.f32.mxu0 0.0
        %1142 = vmatmul.mubr.f32.gmra.mrb[0].mxu0 %v1018
        %v1143 = vpop.f32.mrb[0].mxu0
        %v1144 = vadd.f32 %v1050, %v1143
        %v1145 = vpop.f32.mrb[0].mxu0
        %1146 = vmatprep.mubr.f32.mxu0 0.0
        %1147 = vmatmul.mubr.f32.gmra.mrb[0].mxu0 %v1019
        %v1148 = vpop.f32.mrb[0].mxu0
        %v1149 = vadd.f32 %v1050, %v1148
        %v1150 = vpop.f32.mrb[0].mxu0
        %1151 = vmatprep.mubr.f32.mxu0 0.0
        %1152 = vmatmul.mubr.f32.gmra.mrb[0].mxu0 %v1020
        %v1153 = vpop.f32.mrb[0].mxu0
        %v1154 = vadd.f32 %v1050, %v1153
        %v1155 = vpop.f32.mrb[0].mxu0
        %1156 = vmatprep.mubr.f32.mxu0 0.0
        %1157 = vmatmul.mubr.f32.gmra.mrb[0].mxu0 %v1021
        %v1158 = vpop.f32.mrb[0].mxu0
        %v1159 = vadd.f32 %v1050, %v1158
        %v1160 = vpop.f32.mrb[0].mxu0
        %1161 = vmatprep.mubr.f32.mxu0 0.0
        %1162 = vmatmul.mubr.f32.gmra.mrb[0].mxu0 %v1022
        %v1163 = vpop.f32.mrb[0].mxu0
        %v1164 = vadd.f32 %v1050, %v1163
        %v1165 = vpop.f32.mrb[0].mxu0
        %1166 = vmatprep.mubr.f32.mxu0 0.0
        %1167 = vmatmul.mubr.f32.gmra.mrb[0].mxu0 %v1023
        %v1168 = vpop.f32.mrb[0].mxu0
        %v1169 = vadd.f32 %v1050, %v1168
        %v1170 = vpop.f32.mrb[0].mxu0
        %1171 = vmatprep.mubr.f32.mxu0 0.0
        %1172 = vmatmul.mubr.f32.gmra.mrb[0].mxu0 %v1024
        %v1173 = vpop.f32.mrb[0].mxu0
        %v1174 = vadd.f32 %v1050, %v1173
        %v1175 = vpop.f32.mrb[0].mxu0
        %1176 = vmatprep.mubr.f32.mxu0 0.0
        %1177 = vmatmul.mubr.f32.gmra.mrb[0].mxu0 %v1025
        %v1178 = vpop.f32.mrb[0].mxu0
        %v1179 = vadd.f32 %v1050, %v1178
        %v1180 = vpop.f32.mrb[0].mxu0
        %1181 = vmatprep.mubr.f32.mxu0 0.0
        %1182 = vmatmul.mubr.f32.gmra.mrb[0].mxu0 %v1026
        %v1183 = vpop.f32.mrb[0].mxu0
        %v1184 = vadd.f32 %v1050, %v1183
        %v1185 = vpop.f32.mrb[0].mxu0
        %1186 = vmatprep.mubr.f32.mxu0 0.0
        %1187 = vmatmul.mubr.f32.gmra.mrb[0].mxu0 %v1027
        %v1188 = vpop.f32.mrb[0].mxu0
        %v1189 = vadd.f32 %v1050, %v1188
        %v1190 = vpop.f32.mrb[0].mxu0
        %1191 = vmatprep.mubr.f32.mxu0 0.0
        %1192 = vmatmul.mubr.f32.gmra.mrb[0].mxu0 %v1028
        %v1193 = vpop.f32.mrb[0].mxu0
        %v1194 = vadd.f32 %v1050, %v1193
        %v1195 = vpop.f32.mrb[0].mxu0
        %1196 = vdwg.mxu0
        %v1197 = vadd.f32 %v1119, %v411
        %v1198 = vadd.f32 %v1124, %v412
        %v1199 = vadd.f32 %v1129, %v413
        %v1200 = vadd.f32 %v1134, %v414
        %v1201 = vadd.f32 %v1139, %v415
        %v1202 = vadd.f32 %v1144, %v416
        %v1203 = vadd.f32 %v1149, %v417
        %v1204 = vadd.f32 %v1154, %v418
        %v1205 = vadd.f32 %v1159, %v419
        %v1206 = vadd.f32 %v1164, %v420
        %v1207 = vadd.f32 %v1169, %v421
        %v1208 = vadd.f32 %v1174, %v422
        %v1209 = vadd.f32 %v1179, %v423
        %v1210 = vadd.f32 %v1184, %v424
        %v1211 = vadd.f32 %v1189, %v425
        %v1212 = vadd.f32 %v1194, %v426
        %1213 = vadd.xlane.f32.xlu0 %v1197
        %v1214 = vpop.xlane.xlu0 %1213
        %1215 = vadd.xlane.f32.xlu0 %v1198
        %v1216 = vpop.xlane.xlu0 %1215
        %1217 = vadd.xlane.f32.xlu0 %v1199
        %v1218 = vpop.xlane.xlu0 %1217
        %1219 = vadd.xlane.f32.xlu0 %v1200
        %v1220 = vpop.xlane.xlu0 %1219
        %1221 = vadd.xlane.f32.xlu0 %v1201
        %v1222 = vpop.xlane.xlu0 %1221
        %1223 = vadd.xlane.f32.xlu0 %v1202
        %v1224 = vpop.xlane.xlu0 %1223
        %1225 = vadd.xlane.f32.xlu0 %v1203
        %v1226 = vpop.xlane.xlu0 %1225
        %1227 = vadd.xlane.f32.xlu0 %v1204
        %v1228 = vpop.xlane.xlu0 %1227
        %1229 = vadd.xlane.f32.xlu0 %v1205
        %v1230 = vpop.xlane.xlu0 %1229
        %1231 = vadd.xlane.f32.xlu0 %v1206
        %v1232 = vpop.xlane.xlu0 %1231
        %1233 = vadd.xlane.f32.xlu0 %v1207
        %v1234 = vpop.xlane.xlu0 %1233
        %1235 = vadd.xlane.f32.xlu0 %v1208
        %v1236 = vpop.xlane.xlu0 %1235
        %1237 = vadd.xlane.f32.xlu0 %v1209
        %v1238 = vpop.xlane.xlu0 %1237
        %1239 = vadd.xlane.f32.xlu0 %v1210
        %v1240 = vpop.xlane.xlu0 %1239
        %1241 = vadd.xlane.f32.xlu0 %v1211
        %v1242 = vpop.xlane.xlu0 %1241
        %1243 = vadd.xlane.f32.xlu0 %v1212
        %v1244 = vpop.xlane.xlu0 %1243
        %v1245 = vrcp.pop 128.0
        %v1246 = vmul.f32 %v1214, %v1245
        %v1247 = vmul.f32 %v1216, %v1245
        %v1248 = vmul.f32 %v1218, %v1245
        %v1249 = vmul.f32 %v1220, %v1245
        %v1250 = vmul.f32 %v1222, %v1245
        %v1251 = vmul.f32 %v1224, %v1245
        %v1252 = vmul.f32 %v1226, %v1245
        %v1253 = vmul.f32 %v1228, %v1245
        %v1254 = vmul.f32 %v1230, %v1245
        %v1255 = vmul.f32 %v1232, %v1245
        %v1256 = vmul.f32 %v1234, %v1245
        %v1257 = vmul.f32 %v1236, %v1245
        %v1258 = vmul.f32 %v1238, %v1245
        %v1259 = vmul.f32 %v1240, %v1245
        %v1260 = vmul.f32 %v1242, %v1245
        %v1261 = vmul.f32 %v1244, %v1245
        %v1262 = vsub.f32 %v1197, %v1246
        %v1263 = vsub.f32 %v1198, %v1247
        %v1264 = vsub.f32 %v1199, %v1248
        %v1265 = vsub.f32 %v1200, %v1249
        %v1266 = vsub.f32 %v1201, %v1250
        %v1267 = vsub.f32 %v1202, %v1251
        %v1268 = vsub.f32 %v1203, %v1252
        %v1269 = vsub.f32 %v1204, %v1253
        %v1270 = vsub.f32 %v1205, %v1254
        %v1271 = vsub.f32 %v1206, %v1255
        %v1272 = vsub.f32 %v1207, %v1256
        %v1273 = vsub.f32 %v1208, %v1257
        %v1274 = vsub.f32 %v1209, %v1258
        %v1275 = vsub.f32 %v1210, %v1259
        %v1276 = vsub.f32 %v1211, %v1260
        %v1277 = vsub.f32 %v1212, %v1261
        %v1278 = vmul.f32 %v1262, %v1262
        %v1279 = vmul.f32 %v1263, %v1263
        %v1280 = vmul.f32 %v1264, %v1264
        %v1281 = vmul.f32 %v1265, %v1265
        %v1282 = vmul.f32 %v1266, %v1266
        %v1283 = vmul.f32 %v1267, %v1267
        %v1284 = vmul.f32 %v1268, %v1268
        %v1285 = vmul.f32 %v1269, %v1269
        %v1286 = vmul.f32 %v1270, %v1270
        %v1287 = vmul.f32 %v1271, %v1271
        %v1288 = vmul.f32 %v1272, %v1272
        %v1289 = vmul.f32 %v1273, %v1273
        %v1290 = vmul.f32 %v1274, %v1274
        %v1291 = vmul.f32 %v1275, %v1275
        %v1292 = vmul.f32 %v1276, %v1276
        %v1293 = vmul.f32 %v1277, %v1277
        %1294 = vadd.xlane.f32.xlu0 %v1278
        %v1295 = vpop.xlane.xlu0 %1294
        %1296 = vadd.xlane.f32.xlu0 %v1279
        %v1297 = vpop.xlane.xlu0 %1296
        %1298 = vadd.xlane.f32.xlu0 %v1280
        %v1299 = vpop.xlane.xlu0 %1298
        %1300 = vadd.xlane.f32.xlu0 %v1281
        %v1301 = vpop.xlane.xlu0 %1300
        %1302 = vadd.xlane.f32.xlu0 %v1282
        %v1303 = vpop.xlane.xlu0 %1302
        %1304 = vadd.xlane.f32.xlu0 %v1283
        %v1305 = vpop.xlane.xlu0 %1304
        %1306 = vadd.xlane.f32.xlu0 %v1284
        %v1307 = vpop.xlane.xlu0 %1306
        %1308 = vadd.xlane.f32.xlu0 %v1285
        %v1309 = vpop.xlane.xlu0 %1308
        %1310 = vadd.xlane.f32.xlu0 %v1286
        %v1311 = vpop.xlane.xlu0 %1310
        %1312 = vadd.xlane.f32.xlu0 %v1287
        %v1313 = vpop.xlane.xlu0 %1312
        %1314 = vadd.xlane.f32.xlu0 %v1288
        %v1315 = vpop.xlane.xlu0 %1314
        %1316 = vadd.xlane.f32.xlu0 %v1289
        %v1317 = vpop.xlane.xlu0 %1316
        %1318 = vadd.xlane.f32.xlu0 %v1290
        %v1319 = vpop.xlane.xlu0 %1318
        %1320 = vadd.xlane.f32.xlu0 %v1291
        %v1321 = vpop.xlane.xlu0 %1320
        %1322 = vadd.xlane.f32.xlu0 %v1292
        %v1323 = vpop.xlane.xlu0 %1322
        %1324 = vadd.xlane.f32.xlu0 %v1293
        %v1325 = vpop.xlane.xlu0 %1324
        %v1326 = vmul.f32 %v1295, %v1245
        %v1327 = vmul.f32 %v1297, %v1245
        %v1328 = vmul.f32 %v1299, %v1245
        %v1329 = vmul.f32 %v1301, %v1245
        %v1330 = vmul.f32 %v1303, %v1245
        %v1331 = vmul.f32 %v1305, %v1245
        %v1332 = vmul.f32 %v1307, %v1245
        %v1333 = vmul.f32 %v1309, %v1245
        %v1334 = vmul.f32 %v1311, %v1245
        %v1335 = vmul.f32 %v1313, %v1245
        %v1336 = vmul.f32 %v1315, %v1245
        %v1337 = vmul.f32 %v1317, %v1245
        %v1338 = vmul.f32 %v1319, %v1245
        %v1339 = vmul.f32 %v1321, %v1245
        %v1340 = vmul.f32 %v1323, %v1245
        %v1341 = vmul.f32 %v1325, %v1245
        %v1342 = vadd.f32 %v1326, 1e-05
        %v1343 = vadd.f32 %v1327, 1e-05
        %v1344 = vadd.f32 %v1328, 1e-05
        %v1345 = vadd.f32 %v1329, 1e-05
        %v1346 = vadd.f32 %v1330, 1e-05
        %v1347 = vadd.f32 %v1331, 1e-05
        %v1348 = vadd.f32 %v1332, 1e-05
        %v1349 = vadd.f32 %v1333, 1e-05
        %v1350 = vadd.f32 %v1334, 1e-05
        %v1351 = vadd.f32 %v1335, 1e-05
        %v1352 = vadd.f32 %v1336, 1e-05
        %v1353 = vadd.f32 %v1337, 1e-05
        %v1354 = vadd.f32 %v1338, 1e-05
        %v1355 = vadd.f32 %v1339, 1e-05
        %v1356 = vadd.f32 %v1340, 1e-05
        %v1357 = vadd.f32 %v1341, 1e-05
        %v1358 = vrsqrt.pop %v1342
        %v1359 = vrsqrt.pop %v1343
        %v1360 = vrsqrt.pop %v1344
        %v1361 = vrsqrt.pop %v1345
        %v1362 = vrsqrt.pop %v1346
        %v1363 = vrsqrt.pop %v1347
        %v1364 = vrsqrt.pop %v1348
        %v1365 = vrsqrt.pop %v1349
        %v1366 = vrsqrt.pop %v1350
        %v1367 = vrsqrt.pop %v1351
        %v1368 = vrsqrt.pop %v1352
        %v1369 = vrsqrt.pop %v1353
        %v1370 = vrsqrt.pop %v1354
        %v1371 = vrsqrt.pop %v1355
        %v1372 = vrsqrt.pop %v1356
        %v1373 = vrsqrt.pop %v1357
        %v1374 = vmul.f32 %v1262, %v1358
        %v1375 = vmul.f32 %v1263, %v1359
        %v1376 = vmul.f32 %v1264, %v1360
        %v1377 = vmul.f32 %v1265, %v1361
        %v1378 = vmul.f32 %v1266, %v1362
        %v1379 = vmul.f32 %v1267, %v1363
        %v1380 = vmul.f32 %v1268, %v1364
        %v1381 = vmul.f32 %v1269, %v1365
        %v1382 = vmul.f32 %v1270, %v1366
        %v1383 = vmul.f32 %v1271, %v1367
        %v1384 = vmul.f32 %v1272, %v1368
        %v1385 = vmul.f32 %v1273, %v1369
        %v1386 = vmul.f32 %v1274, %v1370
        %v1387 = vmul.f32 %v1275, %v1371
        %v1388 = vmul.f32 %v1276, %v1372
        %v1389 = vmul.f32 %v1277, %v1373
        %v1390 = vld [vmem:[%s7] sm:$0x1]
        %v1392 = vlaneseq
        %v1393 = vshrl.u32 %v1392, 7
        %v1394 = vsub.s32 0, %v1393
        %v1395 = vrot.slane %v1390, %v1394
        %v1397 = vmul.f32 %v1374, %v1395
        %v1398 = vmul.f32 %v1375, %v1395
        %v1399 = vmul.f32 %v1376, %v1395
        %v1400 = vmul.f32 %v1377, %v1395
        %v1401 = vmul.f32 %v1378, %v1395
        %v1402 = vmul.f32 %v1379, %v1395
        %v1403 = vmul.f32 %v1380, %v1395
        %v1404 = vmul.f32 %v1381, %v1395
        %v1405 = vmul.f32 %v1382, %v1395
        %v1406 = vmul.f32 %v1383, %v1395
        %v1407 = vmul.f32 %v1384, %v1395
        %v1408 = vmul.f32 %v1385, %v1395
        %v1409 = vmul.f32 %v1386, %v1395
        %v1410 = vmul.f32 %v1387, %v1395
        %v1411 = vmul.f32 %v1388, %v1395
        %v1412 = vmul.f32 %v1389, %v1395
        %v1413 = vld [vmem:[%s8] sm:$0x1]
        %v1415 = vlaneseq
        %v1416 = vshrl.u32 %v1415, 7
        %v1417 = vsub.s32 0, %v1416
        %v1418 = vrot.slane %v1413, %v1417
        %v1420 = vadd.f32 %v1397, %v1418
        %v1421 = vadd.f32 %v1398, %v1418
        %v1422 = vadd.f32 %v1399, %v1418
        %v1423 = vadd.f32 %v1400, %v1418
        %v1424 = vadd.f32 %v1401, %v1418
        %v1425 = vadd.f32 %v1402, %v1418
        %v1426 = vadd.f32 %v1403, %v1418
        %v1427 = vadd.f32 %v1404, %v1418
        %v1428 = vadd.f32 %v1405, %v1418
        %v1429 = vadd.f32 %v1406, %v1418
        %v1430 = vadd.f32 %v1407, %v1418
        %v1431 = vadd.f32 %v1408, %v1418
        %v1432 = vadd.f32 %v1409, %v1418
        %v1433 = vadd.f32 %v1410, %v1418
        %v1434 = vadd.f32 %v1411, %v1418
        %v1435 = vadd.f32 %v1412, %v1418
        %1436 = vst [vmem:[%s408] sm:$0xff] %v1420
        %1437 = vst [vmem:[%s408 + $0x8] sm:$0xff] %v1421
        %1438 = vst [vmem:[%s408 + $0x10] sm:$0xff] %v1422
        %1439 = vst [vmem:[%s408 + $0x18] sm:$0xff] %v1423
        %1440 = vst [vmem:[%s408 + $0x20] sm:$0xff] %v1424
        %1441 = vst [vmem:[%s408 + $0x28] sm:$0xff] %v1425
        %1442 = vst [vmem:[%s408 + $0x30] sm:$0xff] %v1426
        %1443 = vst [vmem:[%s408 + $0x38] sm:$0xff] %v1427
        %1444 = vst [vmem:[%s408 + $0x40] sm:$0xff] %v1428
        %1445 = vst [vmem:[%s408 + $0x48] sm:$0xff] %v1429
        %1446 = vst [vmem:[%s408 + $0x50] sm:$0xff] %v1430
        %1447 = vst [vmem:[%s408 + $0x58] sm:$0xff] %v1431
        %1448 = vst [vmem:[%s408 + $0x60] sm:$0xff] %v1432
        %1449 = vst [vmem:[%s408 + $0x68] sm:$0xff] %v1433
        %1450 = vst [vmem:[%s408 + $0x70] sm:$0xff] %v1434
        %1451 = vst [vmem:[%s408 + $0x78] sm:$0xff] %v1435
        %s1452 = sand.u32 %s230, 1
        %s1453 = scalar_lea.sflag [#allocation4], %s1452
        %s1454 = sand.u32 %s230, 1
        %s1455 = smul.addr %s1454, 128
        %s1456 = scalar_lea.vmem [#allocation11], %s1455
        // Predicated region
        $region77: #{tpu_custom_call.1} parent=55 // pred_check
          %p1457 = pneg %p240
        $region78: #{tpu_custom_call.1} parent=55 // pred_check_branch
          %1459 = sbr.rel (%p1457) target = $region80
        $region79: #{tpu_custom_call.1} parent=55 // pred_region
          %s1460 = smul.u32 16, %s28
          %s1462 = ssub.s32 2048, 2048
          %1463 = vsyncadd %s1453, %s1462
          %s1464 = smul.addr %s1460, 128
          %s1465 = scalar_lea.hbm %s9, %s1464
          %s1466 = sshll.u32 %s1456, 4
          %s1467 = int_to_ptr.vmem [resolvable:$true] %s1466
          %1472 = dma.vmem_to_hbm [thread:$0]  %s1467, 2048, %s1465, %s1453, 128, 128, 8
        $region80: #{tpu_custom_call.1} parent=55 // pred_fallthru
          _
      $region56: #{tpu_custom_call.1} parent=5 // pred_fallthru
        _
      %p1473 = scmp.le.s32.totalorder 2, %s23
      // Predicated region
      $region81: #{tpu_custom_call.1} parent=5 // pred_check
        %p1474 = pneg %p1473
      $region82: #{tpu_custom_call.1} parent=5 // pred_check_branch
        %1476 = sbr.rel (%p1474) target = $region84
      $region83: #{tpu_custom_call.1} parent=5 // pred_region
        %s1477 = ssub.s32 %s23, 2
        // Predicated region
        $region85: #{tpu_custom_call.1} parent=83 // pred_check
          %p1478 = pneg %p246
        $region86: #{tpu_custom_call.1} parent=83 // pred_check_branch
          %1480 = sbr.rel (%p1478) target = $region88
        $region87: #{tpu_custom_call.1} parent=83 // pred_region
          %s1481 = sand.u32 %s231, 1
          %s1482 = scalar_lea.sflag [#allocation4], %s1481
          %s1483 = sand.u32 %s231, 1
          %s1484 = smul.addr %s1483, 128
          %s1485 = scalar_lea.vmem [#allocation11], %s1484
          %1486 = dma.done %s1482, 2048
        $region88: #{tpu_custom_call.1} parent=83 // pred_fallthru
          _
      $region84: #{tpu_custom_call.1} parent=5 // pred_fallthru
        _
    $region6: #{tpu_custom_call.1} parent=1 // loop_footer
      %s27 = sadd.s32 1, %s23
    $region7: #{tpu_custom_call.1} parent=1 // loop_footer_branch
      %22 = sbr.rel target = $region3
    $region8: #{tpu_custom_call.1} parent=1 // loop_exit
      _
    %1487 = vsyncpa [#allocation3], 1
    %s1488 = scalar_lea.sflag [#allocation3], 1
    %1489 = vsyncpa %s1488, 1
    %1490 = vsyncpa [#allocation6], 1
    %1491 = vsyncpa [#allocation9], 1
    %1492 = vsyncpa [#allocation4], 1
    %s1493 = scalar_lea.sflag [#allocation4], 1
    %1494 = vsyncpa %s1493, 1

</llo_original>
